<compile_context>
chip_gen: v6e
topology: v6e:2x2x1
jax: 0.10.0
libtpu: 0.0.40
codegen_flags: <defaults>
</compile_context>

<pallas_src>
import functools

import numpy as np
import jax
import jax.numpy as jnp
from jax.experimental import pallas as pl
from jax.experimental.pallas import tpu as pltpu


def _ema_weight_cat(batch_size, afwd):
    """(B, 2B) constant reproducing the module's conv-along-batch.

    tmp[i] = sum_{s>i}   afwd^(i+B-s) * prev[s]   (left half, strictly upper tri)
           + sum_{t<=i}  afwd^(i-t)   * cur[t]    (right half, lower tri incl. diag)
    i.e. tmp = W_cat @ concat([prev, cur], axis=0).
    """
    i = np.arange(batch_size)
    d = i[:, None] - i[None, :]
    w_cur = np.where(d >= 0, afwd ** np.maximum(d, 0), 0.0)
    w_prev = np.where(d < 0, afwd ** (d + batch_size), 0.0)
    w_cat = np.concatenate([w_prev, w_cur], axis=1).astype(np.float32)
    return jnp.asarray(w_cat)


def _vmem_budget():
    """Per-generation VMEM sizing: (block+temp budget bytes, vmem_limit_bytes)."""
    cap = None
    try:
        info = pltpu.get_tpu_info()
        cap = getattr(info, "vmem_capacity_bytes", None)
    except Exception:
        cap = None
    if not cap or cap <= 0:
        cap = 64 << 20                         # conservative fallback (v7x per-TC VMEM)
    # Raise above the 16/32 MiB default scoped limits (v5e/v6e) but stay well
    # below physical VMEM on every generation (v7x has only 64 MiB per TC).
    vmem_limit = int(min(int(cap) * 3 // 4, 64 << 20))
    budget = int(vmem_limit * 7 // 8)          # headroom for weights / internal scratch
    return budget, vmem_limit


def _pick_block_l(batch_size, num_features, itemsize, budget):
    """Feature-tile width.

    Largest 128-multiple whose double-buffered pipeline blocks (9 data streams)
    PLUS the kernel's live f32 intermediates (~12 (B, bl) values) fit `budget`.
    When the full feature width would fit in one tile, cap at half-width so the
    'parallel' grid axis still has >= 2 steps (keeps both v7x TensorCores busy).
    """
    per_col = 2 * 9 * batch_size * itemsize + 12 * batch_size * 4
    bl = int(budget // per_col) // 128 * 128
    bl = max(128, bl)
    if bl >= num_features:
        half = (num_features // 2) // 128 * 128
        bl = half if half >= 128 else num_features
    return int(min(bl, num_features))


def _stale_shift(curr, stream_ref):
    """stale[0] = stream[B-1]; stale[i>=1] = curr[i-1]  (one sublane roll)."""
    b = curr.shape[0]
    rolled = pltpu.roll(curr, shift=1, axis=0)                       # rolled[i] = curr[i-1]
    last = stream_ref[pl.ds(b - 1, 1), :].astype(curr.dtype)          # (1, bl) last stream row
    last = jnp.broadcast_to(last, curr.shape)
    row = jax.lax.broadcasted_iota(jnp.int32, curr.shape, 0)
    return jnp.where(row == 0, last, rolled)


def _norm1d_fwd_kernel(x_ref, mp_ref, vp_ref, m_ref, v_ref, w_ref,
                       out_ref, mnew_ref, vnew_ref, vcur_ref, *, afwd, eps):
    f32 = jnp.float32
    b_size = x_ref.shape[0]
    afwd_b = afwd ** b_size            # static python scalar, baked at trace time
    one_minus = 1.0 - afwd
    highest = jax.lax.Precision.HIGHEST

    x = x_ref[...].astype(f32)
    m_p = mp_ref[...].astype(f32)
    var_p = vp_ref[...].astype(f32)
    m_stream = m_ref[...].astype(f32)
    v_stream = v_ref[...].astype(f32)
    w_cat = w_ref[...]                 # (B, 2B) = [W_prev | W_cur], f32

    # ---- mean EMA, linearized over the batch: one (B,2B)x(2B,bl) MXU matmul ----
    tmp_mu = jnp.dot(w_cat, jnp.concatenate([m_p, x], axis=0),
                     preferred_element_type=f32, precision=highest)
    mu_new = afwd_b * m_stream + one_minus * tmp_mu       # updated stream state m
    mu_stale = _stale_shift(mu_new, m_ref)                 # mu_{t-1} seen by row t

    xc = x - mu_stale
    var_cur = afwd * xc * xc                               # this step's var statistic

    # ---- variance EMA (same linearization, second fused matmul) ----
    tmp_v = jnp.dot(w_cat, jnp.concatenate([var_p, var_cur], axis=0),
                    preferred_element_type=f32, precision=highest)
    var_new = afwd_b * v_stream + one_minus * tmp_v        # updated stream state var
    var_stale = _stale_shift(var_new, v_ref)               # var_{t-1} seen by row t

    out = xc * jax.lax.rsqrt(var_stale + eps)              # rsqrt: single EUP op

    out_ref[...] = out.astype(out_ref.dtype)
    mnew_ref[...] = mu_new.astype(mnew_ref.dtype)
    vnew_ref[...] = var_new.astype(vnew_ref.dtype)
    vcur_ref[...] = var_cur.astype(vcur_ref.dtype)


def norm1d_batched_forward(x, m_p, var_p, m, var, *,
                           alpha_fwd=0.999, eps=1e-5, block_l=None):
    """Training-mode forward of Norm1dBatched.

    Args:
      x: (B, L) input.
      m_p, var_p, m, var: (B, L) streaming-state buffers (module registers).
    Returns:
      out: (B, L) normalized output (x.dtype).
      new_state: (m_p, var_p, m, var) updated buffers.
    """
    b_size, num_features = x.shape
    for s in (m_p, var_p, m, var):
        assert s.shape == (b_size, num_features), "state/input shape mismatch"

    w_cat = _ema_weight_cat(b_size, float(alpha_fwd))

    itemsize = max(int(np.dtype(x.dtype).itemsize), 4)   # f32 temps dominate anyway
    budget, vmem_limit = _vmem_budget()
    if block_l is None:
        block_l = _pick_block_l(b_size, num_features, itemsize, budget)
    grid = (pl.cdiv(num_features, block_l),)

    bl_spec = pl.BlockSpec((b_size, block_l), lambda j: (0, j))
    # Constant index map -> the tiny weight block is DMA'd only once.
    w_spec = pl.BlockSpec((b_size, 2 * b_size), lambda j: (0, 0))

    kernel = functools.partial(_norm1d_fwd_kernel,
                               afwd=float(alpha_fwd), eps=float(eps))

    out_shapes = (
        jax.ShapeDtypeStruct((b_size, num_features), x.dtype),      # out
        jax.ShapeDtypeStruct((b_size, num_features), m.dtype),      # new m
        jax.ShapeDtypeStruct((b_size, num_features), var.dtype),    # new var
        jax.ShapeDtypeStruct((b_size, num_features), var_p.dtype),  # new var_p (= var_current)
    )

    out, m_new, var_new, var_p_new = pl.pallas_call(
        kernel,
        out_shape=out_shapes,
        grid=grid,
        in_specs=[bl_spec, bl_spec, bl_spec, bl_spec, bl_spec, w_spec],
        out_specs=(bl_spec, bl_spec, bl_spec, bl_spec),
        compiler_params=pltpu.CompilerParams(
            dimension_semantics=("parallel",),
            vmem_limit_bytes=int(vmem_limit)),
    )(x, m_p, var_p, m, var, w_cat)

    # The module also sets m_p <- input (a plain copy; no kernel work needed).
    m_p_new = x if x.dtype == m_p.dtype else x.astype(m_p.dtype)
    return out, (m_p_new, var_p_new, m_new, var_new)


def _reference(x, m_p, var_p, m, var, *, afwd, eps):
    """Strict sequential per-row recursion (the math in the module docstring).

    The module's conv-along-batch linearization equals this recursion whenever
    the state buffers are self-consistent (true from the canonical init and
    preserved by every forward call), so it is an independent check.
    """
    del m_p, var_p  # absorbed into the streaming state for consistent buffers
    mu = m[-1].astype(jnp.float32)
    v = var[-1].astype(jnp.float32)
    outs, mus, vs, vcs = [], [], [], []
    for t in range(x.shape[0]):
        xt = x[t].astype(jnp.float32)
        xc = xt - mu
        outs.append(xc / jnp.sqrt(v + eps))
        vc = afwd * xc * xc
        mu = afwd * mu + (1.0 - afwd) * xt
        v = afwd * v + (1.0 - afwd) * vc
        mus.append(mu)
        vs.append(v)
        vcs.append(vc)
    out = jnp.stack(outs)
    return out, (x, jnp.stack(vcs), jnp.stack(mus), jnp.stack(vs))


if __name__ == "__main__":
    key = jax.random.PRNGKey(0)
    B, L = 8, 512                      # small (N, L) consistent with the module
    afwd, eps = 0.999, 1e-5

    k1, k2 = jax.random.split(key)
    x1 = jax.random.normal(k1, (B, L), dtype=jnp.float32)
    x2 = 0.5 + 2.0 * jax.random.normal(k2, (B, L), dtype=jnp.float32)

    # Canonical module state: m_p = 0, var_p = 1, m = 0, var = 1.
    state0 = (jnp.zeros((B, L), jnp.float32), jnp.ones((B, L), jnp.float32),
              jnp.zeros((B, L), jnp.float32), jnp.ones((B, L), jnp.float32))

    # Two steps to exercise the state-carry path.
    out1, state1 = norm1d_batched_forward(x1, *state0, alpha_fwd=afwd, eps=eps)
    out2, state2 = norm1d_batched_forward(x2, *state1, alpha_fwd=afwd, eps=eps)
    jax.block_until_ready((out1, out2) + tuple(state2))

    # Correctness vs an independent plain-JAX sequential recursion.
    r_out1, r_state1 = _reference(x1, *state0, afwd=afwd, eps=eps)
    r_out2, r_state2 = _reference(x2, *r_state1, afwd=afwd, eps=eps)

    assert out2.shape == x2.shape and out2.dtype == x2.dtype
    checks = [(out1, r_out1), (out2, r_out2)] + list(zip(state2, r_state2))
    for got, ref in checks:
        assert jnp.allclose(got, ref, rtol=1e-3, atol=1e-3), \
            "mismatch vs reference online-norm forward"

    print("KERNEL_OK")
</pallas_src>

<mosaic_0001>
module attributes {stable_mosaic.version = 11 : i64} {
  func.func @_norm1d_fwd_kernel(%arg0: i32, %arg1: memref<8x256xf32, #tpu.memory_space<vmem>>, %arg2: memref<8x256xf32, #tpu.memory_space<vmem>>, %arg3: memref<8x256xf32, #tpu.memory_space<vmem>>, %arg4: memref<8x256xf32, #tpu.memory_space<vmem>>, %arg5: memref<8x256xf32, #tpu.memory_space<vmem>>, %arg6: memref<8x16xf32, #tpu.memory_space<vmem>>, %arg7: memref<8x256xf32, #tpu.memory_space<vmem>>, %arg8: memref<8x256xf32, #tpu.memory_space<vmem>>, %arg9: memref<8x256xf32, #tpu.memory_space<vmem>>, %arg10: memref<8x256xf32, #tpu.memory_space<vmem>>) attributes {dimension_semantics = [#tpu.dimension_semantics<parallel>], iteration_bounds = array<i64: 2>, scalar_prefetch = 0 : i64, scratch_operands = 0 : i64, tpu.core_type = #tpu.core_type<tc>, window_params = [{transform_indices = @transform_0, window_bounds = array<i64: 8, 256>}, {transform_indices = @transform_1, window_bounds = array<i64: 8, 256>}, {transform_indices = @transform_2, window_bounds = array<i64: 8, 256>}, {transform_indices = @transform_3, window_bounds = array<i64: 8, 256>}, {transform_indices = @transform_4, window_bounds = array<i64: 8, 256>}, {pipeline_mode = #tpu.pipeline_mode<synchronous>, transform_indices = @transform_5, window_bounds = array<i64: 8, 16>}, {transform_indices = @transform_6, window_bounds = array<i64: 8, 256>}, {transform_indices = @transform_7, window_bounds = array<i64: 8, 256>}, {transform_indices = @transform_8, window_bounds = array<i64: 8, 256>}, {transform_indices = @transform_9, window_bounds = array<i64: 8, 256>}]} {
    %c0 = arith.constant 0 : index
    %c0_0 = arith.constant 0 : index
    %0 = vector.load %arg1[%c0, %c0_0] : memref<8x256xf32, #tpu.memory_space<vmem>>, vector<8x256xf32>
    %c0_1 = arith.constant 0 : index
    %c0_2 = arith.constant 0 : index
    %1 = vector.load %arg2[%c0_1, %c0_2] : memref<8x256xf32, #tpu.memory_space<vmem>>, vector<8x256xf32>
    %c0_3 = arith.constant 0 : index
    %c0_4 = arith.constant 0 : index
    %2 = vector.load %arg3[%c0_3, %c0_4] : memref<8x256xf32, #tpu.memory_space<vmem>>, vector<8x256xf32>
    %c0_5 = arith.constant 0 : index
    %c0_6 = arith.constant 0 : index
    %3 = vector.load %arg4[%c0_5, %c0_6] : memref<8x256xf32, #tpu.memory_space<vmem>>, vector<8x256xf32>
    %c0_7 = arith.constant 0 : index
    %c0_8 = arith.constant 0 : index
    %4 = vector.load %arg5[%c0_7, %c0_8] : memref<8x256xf32, #tpu.memory_space<vmem>>, vector<8x256xf32>
    %c0_9 = arith.constant 0 : index
    %c0_10 = arith.constant 0 : index
    %5 = vector.load %arg6[%c0_9, %c0_10] : memref<8x16xf32, #tpu.memory_space<vmem>>, vector<8x16xf32>
    %6 = tpu.concatenate %1, %0 in 0 : vector<8x256xf32>, vector<8x256xf32> -> vector<16x256xf32>
    %cst = arith.constant dense<0.000000e+00> : vector<8x256xf32>
    %7 = tpu.matmul %5, %6, %cst {dimension_numbers = #tpu.dot_dimension_numbers<[1], [0], [0], [1], [0, 0, 1, 1], [], []>, precision = #tpu.contract_precision<fp32>} : vector<8x16xf32>, vector<16x256xf32>, vector<8x256xf32> -> vector<8x256xf32>
    %cst_11 = arith.constant 0.992027938 : f32
    %8 = vector.broadcast %cst_11 : f32 to vector<8x256xf32>
    %9 = arith.mulf %8, %3 : vector<8x256xf32>
    %cst_12 = arith.constant 1.000000e-03 : f32
    %10 = vector.broadcast %cst_12 : f32 to vector<8x256xf32>
    %11 = arith.mulf %10, %7 : vector<8x256xf32>
    %12 = arith.addf %9, %11 : vector<8x256xf32>
    %c1_i32 = arith.constant 1 : i32
    %13 = tpu.dynamic_rotate %12 by %c1_i32 dim 0 : vector<8x256xf32>, i32 -> vector<8x256xf32>
    %c7 = arith.constant 7 : index
    %c0_13 = arith.constant 0 : index
    %14 = vector.load %arg4[%c7, %c0_13] : memref<8x256xf32, #tpu.memory_space<vmem>>, vector<1x256xf32>
    %15 = vector.shape_cast %14 : vector<1x256xf32> to vector<1x256xf32>
    %16 = vector.broadcast %15 : vector<1x256xf32> to vector<8x256xf32>
    %17 = tpu.iota {dimensions = array<i32: 0>} : vector<8x256xi32>
    %c0_i32 = arith.constant 0 : i32
    %18 = vector.broadcast %c0_i32 : i32 to vector<8x256xi32>
    %19 = arith.cmpi eq, %17, %18 : vector<8x256xi32>
    %20 = arith.select %19, %16, %13 : vector<8x256xi1>, vector<8x256xf32>
    %21 = arith.subf %0, %20 : vector<8x256xf32>
    %cst_14 = arith.constant 9.990000e-01 : f32
    %22 = vector.broadcast %cst_14 : f32 to vector<8x256xf32>
    %23 = arith.mulf %22, %21 : vector<8x256xf32>
    %24 = arith.mulf %23, %21 : vector<8x256xf32>
    %25 = tpu.concatenate %2, %24 in 0 : vector<8x256xf32>, vector<8x256xf32> -> vector<16x256xf32>
    %cst_15 = arith.constant dense<0.000000e+00> : vector<8x256xf32>
    %26 = tpu.matmul %5, %25, %cst_15 {dimension_numbers = #tpu.dot_dimension_numbers<[1], [0], [0], [1], [0, 0, 1, 1], [], []>, precision = #tpu.contract_precision<fp32>} : vector<8x16xf32>, vector<16x256xf32>, vector<8x256xf32> -> vector<8x256xf32>
    %cst_16 = arith.constant 0.992027938 : f32
    %27 = vector.broadcast %cst_16 : f32 to vector<8x256xf32>
    %28 = arith.mulf %27, %4 : vector<8x256xf32>
    %cst_17 = arith.constant 1.000000e-03 : f32
    %29 = vector.broadcast %cst_17 : f32 to vector<8x256xf32>
    %30 = arith.mulf %29, %26 : vector<8x256xf32>
    %31 = arith.addf %28, %30 : vector<8x256xf32>
    %c1_i32_18 = arith.constant 1 : i32
    %32 = tpu.dynamic_rotate %31 by %c1_i32_18 dim 0 : vector<8x256xf32>, i32 -> vector<8x256xf32>
    %c7_19 = arith.constant 7 : index
    %c0_20 = arith.constant 0 : index
    %33 = vector.load %arg5[%c7_19, %c0_20] : memref<8x256xf32, #tpu.memory_space<vmem>>, vector<1x256xf32>
    %34 = vector.shape_cast %33 : vector<1x256xf32> to vector<1x256xf32>
    %35 = vector.broadcast %34 : vector<1x256xf32> to vector<8x256xf32>
    %36 = tpu.iota {dimensions = array<i32: 0>} : vector<8x256xi32>
    %c0_i32_21 = arith.constant 0 : i32
    %37 = vector.broadcast %c0_i32_21 : i32 to vector<8x256xi32>
    %38 = arith.cmpi eq, %36, %37 : vector<8x256xi32>
    %39 = arith.select %38, %35, %32 : vector<8x256xi1>, vector<8x256xf32>
    %cst_22 = arith.constant 9.99999974E-6 : f32
    %40 = vector.broadcast %cst_22 : f32 to vector<8x256xf32>
    %41 = arith.addf %39, %40 : vector<8x256xf32>
    %42 = math.rsqrt %41 : vector<8x256xf32>
    %43 = arith.mulf %21, %42 : vector<8x256xf32>
    %c0_23 = arith.constant 0 : index
    %c0_24 = arith.constant 0 : index
    %44 = vector.load %arg7[%c0_23, %c0_24] : memref<8x256xf32, #tpu.memory_space<vmem>>, vector<8x256xf32>
    tpu.vector_store %arg7[%c0_23, %c0_24], %43 {strides = array<i32>} : memref<8x256xf32, #tpu.memory_space<vmem>>, vector<8x256xf32>,
    %c0_25 = arith.constant 0 : index
    %c0_26 = arith.constant 0 : index
    %45 = vector.load %arg8[%c0_25, %c0_26] : memref<8x256xf32, #tpu.memory_space<vmem>>, vector<8x256xf32>
    tpu.vector_store %arg8[%c0_25, %c0_26], %12 {strides = array<i32>} : memref<8x256xf32, #tpu.memory_space<vmem>>, vector<8x256xf32>,
    %c0_27 = arith.constant 0 : index
    %c0_28 = arith.constant 0 : index
    %46 = vector.load %arg9[%c0_27, %c0_28] : memref<8x256xf32, #tpu.memory_space<vmem>>, vector<8x256xf32>
    tpu.vector_store %arg9[%c0_27, %c0_28], %31 {strides = array<i32>} : memref<8x256xf32, #tpu.memory_space<vmem>>, vector<8x256xf32>,
    %c0_29 = arith.constant 0 : index
    %c0_30 = arith.constant 0 : index
    %47 = vector.load %arg10[%c0_29, %c0_30] : memref<8x256xf32, #tpu.memory_space<vmem>>, vector<8x256xf32>
    tpu.vector_store %arg10[%c0_29, %c0_30], %24 {strides = array<i32>} : memref<8x256xf32, #tpu.memory_space<vmem>>, vector<8x256xf32>,
    return
  }
  func.func @transform_0(%arg0: i32) -> (i32, i32) {
    %c0_i32 = arith.constant 0 : i32
    %c0_i32_0 = arith.constant 0 : i32
    return %c0_i32, %arg0 : i32, i32
  }
  func.func @transform_1(%arg0: i32) -> (i32, i32) {
    %c0_i32 = arith.constant 0 : i32
    %c0_i32_0 = arith.constant 0 : i32
    return %c0_i32, %arg0 : i32, i32
  }
  func.func @transform_2(%arg0: i32) -> (i32, i32) {
    %c0_i32 = arith.constant 0 : i32
    %c0_i32_0 = arith.constant 0 : i32
    return %c0_i32, %arg0 : i32, i32
  }
  func.func @transform_3(%arg0: i32) -> (i32, i32) {
    %c0_i32 = arith.constant 0 : i32
    %c0_i32_0 = arith.constant 0 : i32
    return %c0_i32, %arg0 : i32, i32
  }
  func.func @transform_4(%arg0: i32) -> (i32, i32) {
    %c0_i32 = arith.constant 0 : i32
    %c0_i32_0 = arith.constant 0 : i32
    return %c0_i32, %arg0 : i32, i32
  }
  func.func @transform_5(%arg0: i32) -> (i32, i32) {
    %c0_i32 = arith.constant 0 : i32
    %c0_i32_0 = arith.constant 0 : i32
    %c0_i32_1 = arith.constant 0 : i32
    return %c0_i32, %c0_i32_0 : i32, i32
  }
  func.func @transform_6(%arg0: i32) -> (i32, i32) {
    %c0_i32 = arith.constant 0 : i32
    %c0_i32_0 = arith.constant 0 : i32
    return %c0_i32, %arg0 : i32, i32
  }
  func.func @transform_7(%arg0: i32) -> (i32, i32) {
    %c0_i32 = arith.constant 0 : i32
    %c0_i32_0 = arith.constant 0 : i32
    return %c0_i32, %arg0 : i32, i32
  }
  func.func @transform_8(%arg0: i32) -> (i32, i32) {
    %c0_i32 = arith.constant 0 : i32
    %c0_i32_0 = arith.constant 0 : i32
    return %c0_i32, %arg0 : i32, i32
  }
  func.func @transform_9(%arg0: i32) -> (i32, i32) {
    %c0_i32 = arith.constant 0 : i32
    %c0_i32_0 = arith.constant 0 : i32
    return %c0_i32, %arg0 : i32, i32
  }
}

</mosaic_0001>

<llo_original>
// kernel: tpu_custom_call.1
$region0: #{tpu_custom_call.1}
  #allocation0 [shape = 'u32[]', space=smem, size = 0x4, offset = 0x4, fixed_abs, tag = 'smem constant byte address 0x4 - core index']
  #allocation1 [shape = 'u32[144,128]{1,0:T(1,128)}', space=vmem, size = 0x12000, scoped, tag = 'internal scratch']
  %s0 = inlined_call_operand.hbm [shape: f32[8,512], index: 0, kind: input, shape index: {}]
  %s1 = inlined_call_operand.hbm [shape: f32[8,512], index: 1, kind: input, shape index: {}]
  %s2 = inlined_call_operand.hbm [shape: f32[8,512], index: 2, kind: input, shape index: {}]
  %s3 = inlined_call_operand.hbm [shape: f32[8,512], index: 3, kind: input, shape index: {}]
  %s4 = inlined_call_operand.hbm [shape: f32[8,512], index: 4, kind: input, shape index: {}]
  %s5 = inlined_call_operand.vmem [shape: f32[8,16], index: 5, kind: input, shape index: {}]
  %s6 = inlined_call_operand.hbm [shape: f32[8,512], index: 6, kind: output, shape index: {0}]
  %s7 = inlined_call_operand.hbm [shape: f32[8,512], index: 7, kind: output, shape index: {1}]
  %s8 = inlined_call_operand.hbm [shape: f32[8,512], index: 8, kind: output, shape index: {2}]
  %s9 = inlined_call_operand.hbm [shape: f32[8,512], index: 9, kind: output, shape index: {3}]
  %10 = xla_tuple %s6, %s7, %s8, %s9
  %s11 = sld [smem:[#allocation0]]
  $region101: #{tpu_custom_call.1} parent=0
    _
  %s13 = ssub.s32 1, %s11
  %s14 = scalar_select 0, %s13, %s11
  $region1: #{tpu_custom_call.1} parent=0
    #allocation2 [shape = 'u8[16384]{0}', space=vmem, size = 0x4000, scoped, tag = 'input window, operand 0']
    #allocation3 [shape = 's32[2]{0}', space=sflag, size = 0x8, scoped, tag = 'scoped memory for tpu_custom_call.1']
    #allocation4 [shape = 's32[2]{0}', space=sflag, size = 0x8, scoped, tag = 'scoped memory for tpu_custom_call.1']
    #allocation5 [shape = 'u8[16384]{0}', space=vmem, size = 0x4000, scoped, tag = 'input window, operand 1']
    #allocation6 [shape = 's32[2]{0}', space=sflag, size = 0x8, scoped, tag = 'scoped memory for tpu_custom_call.1']
    #allocation7 [shape = 'u8[16384]{0}', space=vmem, size = 0x4000, scoped, tag = 'input window, operand 2']
    #allocation8 [shape = 'u8[16384]{0}', space=vmem, size = 0x4000, scoped, tag = 'input window, operand 3']
    #allocation9 [shape = 's32[2]{0}', space=sflag, size = 0x8, scoped, tag = 'scoped memory for tpu_custom_call.1']
    #allocation10 [shape = 'u8[16384]{0}', space=vmem, size = 0x4000, scoped, tag = 'input window, operand 4']
    #allocation11 [shape = 'u8[16384]{0}', space=vmem, size = 0x4000, scoped, tag = 'output window, operand 0']
    #allocation12 [shape = 'u8[16384]{0}', space=vmem, size = 0x4000, scoped, tag = 'output window, operand 1']
    #allocation13 [shape = 's32[2]{0}', space=sflag, size = 0x8, scoped, tag = 'scoped memory for tpu_custom_call.1']
    #allocation14 [shape = 'u8[16384]{0}', space=vmem, size = 0x4000, scoped, tag = 'output window, operand 2']
    #allocation15 [shape = 'u8[16384]{0}', space=vmem, size = 0x4000, scoped, tag = 'output window, operand 3']
    #allocation16 [shape = 's32[2]{0}', space=sflag, size = 0x8, scoped, tag = 'scoped memory for tpu_custom_call.1']
    %15 = vsyncpa [#allocation3], 0
    %s16 = scalar_lea.sflag [#allocation3], 1
    %17 = vsyncpa %s16, 0
    %18 = vsyncpa [#allocation6], 0
    %s19 = scalar_lea.sflag [#allocation6], 1
    %20 = vsyncpa %s19, 0
    %21 = vsyncpa [#allocation9], 0
    %s22 = scalar_lea.sflag [#allocation9], 1
    %23 = vsyncpa %s22, 0
    %24 = vsyncpa [#allocation4], 0
    %s25 = scalar_lea.sflag [#allocation4], 1
    %26 = vsyncpa %s25, 0
    %27 = vsyncpa [#allocation13], 0
    %s28 = scalar_lea.sflag [#allocation13], 1
    %29 = vsyncpa %s28, 0
    %30 = vsyncpa [#allocation16], 0
    %s31 = scalar_lea.sflag [#allocation16], 1
    %32 = vsyncpa %s31, 0
    loop: start=0, step=1, limit=4
    $region2: #{tpu_custom_call.1} parent=1 // loop_pre_header
      _
    $region3: #{tpu_custom_call.1} parent=1 // loop_header
      %s34 = sphi 0, %s38
      %p35 = scmp.ge.s32.totalorder %s34, 4
      %s44 = sphi 0, %s46
      %s47 = sphi 0, %s44
      %s48 = sphi 0, %s47
      %s64 = sphi 0, %s48
      %s70 = sphi 0, %s72
      %s73 = sphi 0, %s70
      %s74 = sphi 0, %s73
      %s90 = sphi 0, %s74
      %s96 = sphi 0, %s98
      %s99 = sphi 0, %s96
      %s100 = sphi 0, %s99
      %s116 = sphi 0, %s100
      %s122 = sphi 0, %s124
      %s125 = sphi 0, %s122
      %s126 = sphi 0, %s125
      %s142 = sphi 0, %s126
      %s148 = sphi 0, %s150
      %s151 = sphi 0, %s148
      %s152 = sphi 0, %s151
      %s168 = sphi 0, %s152
      %s172 = sphi 0, %s172
      %s174 = sphi 0, %s172
      %s175 = sphi 0, %s174
      %s189 = sphi 0, %s175
      %s195 = sphi 0, %s197
      %s198 = sphi 0, %s195
      %s199 = sphi 0, %s198
      %s215 = sphi 0, %s199
      %s221 = sphi 0, %s223
      %s224 = sphi 0, %s221
      %s225 = sphi 0, %s224
      %s241 = sphi 0, %s225
      %s247 = sphi 0, %s249
      %s250 = sphi 0, %s247
      %s251 = sphi 0, %s250
      %s267 = sphi 0, %s251
      %s273 = sphi 0, %s275
      %s276 = sphi 0, %s273
      %s277 = sphi 0, %s276
      %s293 = sphi 0, %s277
    $region4: #{tpu_custom_call.1} parent=1 // loop_header_branch
      %37 = sbr.rel (%p35) target = $region8
    $region5: #{tpu_custom_call.1} parent=1 // loop_body
      %s39 = ssub.s32 %s34, 1
      %s40 = ssub.s32 %s34, 2
      %s41 = sadd.s32 %s34, 1
      %s42 = ssub.s32 %s34, %s41
      %p43 = scmp.eq.s32.totalorder %s42, 0
      %s45 = sadd.s32 %s44, 1
      %s46 = scalar_select %p43, %s44, %s45
      %p49 = pneg %p43
      %p50 = scmp.eq.s32.totalorder %s34, 1
      %p51 = por %p49, %p50
      %p52 = scmp.ne.s32.totalorder %s44, %s47
      %p53 = scmp.eq.s32.totalorder %s34, 0
      %p54 = por %p52, %p53
      %p55 = scmp.ne.s32.totalorder %s44, %s47
      %p56 = scmp.eq.s32.totalorder %s39, 1
      %p57 = por %p55, %p56
      %p58 = scmp.ne.s32.totalorder %s47, %s48
      %p59 = scmp.eq.s32.totalorder %s39, 0
      %p60 = por %p58, %p59
      %p61 = scmp.ne.s32.totalorder %s47, %s48
      %p62 = scmp.eq.s32.totalorder %s40, 1
      %p63 = por %p61, %p62
      %p65 = scmp.ne.s32.totalorder %s48, %s64
      %p66 = scmp.eq.s32.totalorder %s40, 0
      %p67 = por %p65, %p66
      %s68 = ssub.s32 %s34, %s41
      %p69 = scmp.eq.s32.totalorder %s68, 0
      %s71 = sadd.s32 %s70, 1
      %s72 = scalar_select %p69, %s70, %s71
      %p75 = pneg %p69
      %p76 = scmp.eq.s32.totalorder %s34, 1
      %p77 = por %p75, %p76
      %p78 = scmp.ne.s32.totalorder %s70, %s73
      %p79 = scmp.eq.s32.totalorder %s34, 0
      %p80 = por %p78, %p79
      %p81 = scmp.ne.s32.totalorder %s70, %s73
      %p82 = scmp.eq.s32.totalorder %s39, 1
      %p83 = por %p81, %p82
      %p84 = scmp.ne.s32.totalorder %s73, %s74
      %p85 = scmp.eq.s32.totalorder %s39, 0
      %p86 = por %p84, %p85
      %p87 = scmp.ne.s32.totalorder %s73, %s74
      %p88 = scmp.eq.s32.totalorder %s40, 1
      %p89 = por %p87, %p88
      %p91 = scmp.ne.s32.totalorder %s74, %s90
      %p92 = scmp.eq.s32.totalorder %s40, 0
      %p93 = por %p91, %p92
      %s94 = ssub.s32 %s34, %s41
      %p95 = scmp.eq.s32.totalorder %s94, 0
      %s97 = sadd.s32 %s96, 1
      %s98 = scalar_select %p95, %s96, %s97
      %p101 = pneg %p95
      %p102 = scmp.eq.s32.totalorder %s34, 1
      %p103 = por %p101, %p102
      %p104 = scmp.ne.s32.totalorder %s96, %s99
      %p105 = scmp.eq.s32.totalorder %s34, 0
      %p106 = por %p104, %p105
      %p107 = scmp.ne.s32.totalorder %s96, %s99
      %p108 = scmp.eq.s32.totalorder %s39, 1
      %p109 = por %p107, %p108
      %p110 = scmp.ne.s32.totalorder %s99, %s100
      %p111 = scmp.eq.s32.totalorder %s39, 0
      %p112 = por %p110, %p111
      %p113 = scmp.ne.s32.totalorder %s99, %s100
      %p114 = scmp.eq.s32.totalorder %s40, 1
      %p115 = por %p113, %p114
      %p117 = scmp.ne.s32.totalorder %s100, %s116
      %p118 = scmp.eq.s32.totalorder %s40, 0
      %p119 = por %p117, %p118
      %s120 = ssub.s32 %s34, %s41
      %p121 = scmp.eq.s32.totalorder %s120, 0
      %s123 = sadd.s32 %s122, 1
      %s124 = scalar_select %p121, %s122, %s123
      %p127 = pneg %p121
      %p128 = scmp.eq.s32.totalorder %s34, 1
      %p129 = por %p127, %p128
      %p130 = scmp.ne.s32.totalorder %s122, %s125
      %p131 = scmp.eq.s32.totalorder %s34, 0
      %p132 = por %p130, %p131
      %p133 = scmp.ne.s32.totalorder %s122, %s125
      %p134 = scmp.eq.s32.totalorder %s39, 1
      %p135 = por %p133, %p134
      %p136 = scmp.ne.s32.totalorder %s125, %s126
      %p137 = scmp.eq.s32.totalorder %s39, 0
      %p138 = por %p136, %p137
      %p139 = scmp.ne.s32.totalorder %s125, %s126
      %p140 = scmp.eq.s32.totalorder %s40, 1
      %p141 = por %p139, %p140
      %p143 = scmp.ne.s32.totalorder %s126, %s142
      %p144 = scmp.eq.s32.totalorder %s40, 0
      %p145 = por %p143, %p144
      %s146 = ssub.s32 %s34, %s41
      %p147 = scmp.eq.s32.totalorder %s146, 0
      %s149 = sadd.s32 %s148, 1
      %s150 = scalar_select %p147, %s148, %s149
      %p153 = pneg %p147
      %p154 = scmp.eq.s32.totalorder %s34, 1
      %p155 = por %p153, %p154
      %p156 = scmp.ne.s32.totalorder %s148, %s151
      %p157 = scmp.eq.s32.totalorder %s34, 0
      %p158 = por %p156, %p157
      %p159 = scmp.ne.s32.totalorder %s148, %s151
      %p160 = scmp.eq.s32.totalorder %s39, 1
      %p161 = por %p159, %p160
      %p162 = scmp.ne.s32.totalorder %s151, %s152
      %p163 = scmp.eq.s32.totalorder %s39, 0
      %p164 = por %p162, %p163
      %p165 = scmp.ne.s32.totalorder %s151, %s152
      %p166 = scmp.eq.s32.totalorder %s40, 1
      %p167 = por %p165, %p166
      %p169 = scmp.ne.s32.totalorder %s152, %s168
      %p170 = scmp.eq.s32.totalorder %s40, 0
      %p171 = por %p169, %p170
      %s173 = sadd.s32 %s172, 1
      %p176 = scmp.eq.s32.totalorder %s34, 1
      %p177 = scmp.ne.s32.totalorder %s172, %s174
      %p178 = scmp.eq.s32.totalorder %s34, 0
      %p179 = por %p177, %p178
      %p180 = scmp.ne.s32.totalorder %s172, %s174
      %p181 = scmp.eq.s32.totalorder %s39, 1
      %p182 = por %p180, %p181
      %p183 = scmp.ne.s32.totalorder %s174, %s175
      %p184 = scmp.eq.s32.totalorder %s39, 0
      %p185 = por %p183, %p184
      %p186 = scmp.ne.s32.totalorder %s174, %s175
      %p187 = scmp.eq.s32.totalorder %s40, 1
      %p188 = por %p186, %p187
      %p190 = scmp.ne.s32.totalorder %s175, %s189
      %p191 = scmp.eq.s32.totalorder %s40, 0
      %p192 = por %p190, %p191
      %s193 = ssub.s32 %s34, %s41
      %p194 = scmp.eq.s32.totalorder %s193, 0
      %s196 = sadd.s32 %s195, 1
      %s197 = scalar_select %p194, %s195, %s196
      %p200 = pneg %p194
      %p201 = scmp.eq.s32.totalorder %s34, 1
      %p202 = por %p200, %p201
      %p203 = scmp.ne.s32.totalorder %s195, %s198
      %p204 = scmp.eq.s32.totalorder %s34, 0
      %p205 = por %p203, %p204
      %p206 = scmp.ne.s32.totalorder %s195, %s198
      %p207 = scmp.eq.s32.totalorder %s39, 1
      %p208 = por %p206, %p207
      %p209 = scmp.ne.s32.totalorder %s198, %s199
      %p210 = scmp.eq.s32.totalorder %s39, 0
      %p211 = por %p209, %p210
      %p212 = scmp.ne.s32.totalorder %s198, %s199
      %p213 = scmp.eq.s32.totalorder %s40, 1
      %p214 = por %p212, %p213
      %p216 = scmp.ne.s32.totalorder %s199, %s215
      %p217 = scmp.eq.s32.totalorder %s40, 0
      %p218 = por %p216, %p217
      %s219 = ssub.s32 %s34, %s41
      %p220 = scmp.eq.s32.totalorder %s219, 0
      %s222 = sadd.s32 %s221, 1
      %s223 = scalar_select %p220, %s221, %s222
      %p226 = pneg %p220
      %p227 = scmp.eq.s32.totalorder %s34, 1
      %p228 = por %p226, %p227
      %p229 = scmp.ne.s32.totalorder %s221, %s224
      %p230 = scmp.eq.s32.totalorder %s34, 0
      %p231 = por %p229, %p230
      %p232 = scmp.ne.s32.totalorder %s221, %s224
      %p233 = scmp.eq.s32.totalorder %s39, 1
      %p234 = por %p232, %p233
      %p235 = scmp.ne.s32.totalorder %s224, %s225
      %p236 = scmp.eq.s32.totalorder %s39, 0
      %p237 = por %p235, %p236
      %p238 = scmp.ne.s32.totalorder %s224, %s225
      %p239 = scmp.eq.s32.totalorder %s40, 1
      %p240 = por %p238, %p239
      %p242 = scmp.ne.s32.totalorder %s225, %s241
      %p243 = scmp.eq.s32.totalorder %s40, 0
      %p244 = por %p242, %p243
      %s245 = ssub.s32 %s34, %s41
      %p246 = scmp.eq.s32.totalorder %s245, 0
      %s248 = sadd.s32 %s247, 1
      %s249 = scalar_select %p246, %s247, %s248
      %p252 = pneg %p246
      %p253 = scmp.eq.s32.totalorder %s34, 1
      %p254 = por %p252, %p253
      %p255 = scmp.ne.s32.totalorder %s247, %s250
      %p256 = scmp.eq.s32.totalorder %s34, 0
      %p257 = por %p255, %p256
      %p258 = scmp.ne.s32.totalorder %s247, %s250
      %p259 = scmp.eq.s32.totalorder %s39, 1
      %p260 = por %p258, %p259
      %p261 = scmp.ne.s32.totalorder %s250, %s251
      %p262 = scmp.eq.s32.totalorder %s39, 0
      %p263 = por %p261, %p262
      %p264 = scmp.ne.s32.totalorder %s250, %s251
      %p265 = scmp.eq.s32.totalorder %s40, 1
      %p266 = por %p264, %p265
      %p268 = scmp.ne.s32.totalorder %s251, %s267
      %p269 = scmp.eq.s32.totalorder %s40, 0
      %p270 = por %p268, %p269
      %s271 = ssub.s32 %s34, %s41
      %p272 = scmp.eq.s32.totalorder %s271, 0
      %s274 = sadd.s32 %s273, 1
      %s275 = scalar_select %p272, %s273, %s274
      %p278 = pneg %p272
      %p279 = scmp.eq.s32.totalorder %s34, 1
      %p280 = por %p278, %p279
      %p281 = scmp.ne.s32.totalorder %s273, %s276
      %p282 = scmp.eq.s32.totalorder %s34, 0
      %p283 = por %p281, %p282
      %p284 = scmp.ne.s32.totalorder %s273, %s276
      %p285 = scmp.eq.s32.totalorder %s39, 1
      %p286 = por %p284, %p285
      %p287 = scmp.ne.s32.totalorder %s276, %s277
      %p288 = scmp.eq.s32.totalorder %s39, 0
      %p289 = por %p287, %p288
      %p290 = scmp.ne.s32.totalorder %s276, %s277
      %p291 = scmp.eq.s32.totalorder %s40, 1
      %p292 = por %p290, %p291
      %p294 = scmp.ne.s32.totalorder %s277, %s293
      %p295 = scmp.eq.s32.totalorder %s40, 0
      %p296 = por %p294, %p295
      %p297 = scmp.le.s32.totalorder 1, %s34
      %p298 = scmp.lt.s32.totalorder %s34, 3
      %p299 = pnand %p297, %p298
      %p300 = pneg %p299
      // Predicated region
      $region9: #{tpu_custom_call.1} parent=5 // pred_check
        _
      $region10: #{tpu_custom_call.1} parent=5 // pred_check_branch
        %302 = sbr.rel (%p299) target = $region12
      $region11: #{tpu_custom_call.1} parent=5 // pred_region
        %s303 = ssub.s32 %s34, 1
        // Predicated region
        $region13: #{tpu_custom_call.1} parent=11 // pred_check
          %p304 = pneg %p185
        $region14: #{tpu_custom_call.1} parent=11 // pred_check_branch
          %306 = sbr.rel (%p304) target = $region16
        $region15: #{tpu_custom_call.1} parent=11 // pred_region
          _
        $region16: #{tpu_custom_call.1} parent=11 // pred_fallthru
          _
      $region12: #{tpu_custom_call.1} parent=5 // pred_fallthru
        _
      %p307 = scmp.lt.s32.totalorder %s34, 2
      // Predicated region
      $region17: #{tpu_custom_call.1} parent=5 // pred_check
        %p308 = pneg %p307
      $region18: #{tpu_custom_call.1} parent=5 // pred_check_branch
        %310 = sbr.rel (%p308) target = $region20
      $region19: #{tpu_custom_call.1} parent=5 // pred_region
        // Predicated region
        $region21: #{tpu_custom_call.1} parent=19 // pred_check
          %p311 = pneg %p54
        $region22: #{tpu_custom_call.1} parent=19 // pred_check_branch
          %313 = sbr.rel (%p311) target = $region24
        $region23: #{tpu_custom_call.1} parent=19 // pred_region
          %s314 = sand.u32 %s44, 1
          %s315 = scalar_lea.sflag [#allocation3], %s314
          %s316 = sand.u32 %s44, 1
          %s317 = smul.addr %s316, 16
          %s318 = scalar_lea.vmem [#allocation2], %s317
          %s319 = smul.u32 2, %s34
          %s321 = ssub.s32 256, 256
          %322 = vsyncadd %s315, %s321
          %s323 = smul.addr %s319, 128
          %s324 = scalar_lea.hbm %s0, %s323
          %s326 = sshll.u32 %s318, 4
          %s327 = int_to_ptr.vmem [resolvable:$true] %s326
          %329 = dma.hbm_to_vmem [thread:$0]  %s324, 256, %s327, %s315
        $region24: #{tpu_custom_call.1} parent=19 // pred_fallthru
          _
        // Predicated region
        $region25: #{tpu_custom_call.1} parent=19 // pred_check
          %p330 = pneg %p80
        $region26: #{tpu_custom_call.1} parent=19 // pred_check_branch
          %332 = sbr.rel (%p330) target = $region28
        $region27: #{tpu_custom_call.1} parent=19 // pred_region
          %s333 = sand.u32 %s34, 1
          %s334 = scalar_lea.sflag [#allocation6], %s333
          %s335 = sand.u32 %s70, 1
          %s336 = smul.addr %s335, 16
          %s337 = scalar_lea.vmem [#allocation5], %s336
          %s338 = smul.u32 2, %s34
          %s340 = ssub.s32 256, 256
          %341 = vsyncadd %s334, %s340
          %s342 = smul.addr %s338, 128
          %s343 = scalar_lea.hbm %s1, %s342
          %s345 = sshll.u32 %s337, 4
          %s346 = int_to_ptr.vmem [resolvable:$true] %s345
          %348 = dma.hbm_to_vmem [thread:$0]  %s343, 256, %s346, %s334
        $region28: #{tpu_custom_call.1} parent=19 // pred_fallthru
          _
        // Predicated region
        $region29: #{tpu_custom_call.1} parent=19 // pred_check
          %p349 = pneg %p106
        $region30: #{tpu_custom_call.1} parent=19 // pred_check_branch
          %351 = sbr.rel (%p349) target = $region32
        $region31: #{tpu_custom_call.1} parent=19 // pred_region
          %s352 = sand.u32 %s34, 1
          %s353 = scalar_lea.sflag [#allocation6], %s352
          %s354 = sand.u32 %s96, 1
          %s355 = smul.addr %s354, 16
          %s356 = scalar_lea.vmem [#allocation7], %s355
          %s357 = smul.u32 2, %s34
          %s359 = ssub.s32 256, 256
          %360 = vsyncadd %s353, %s359
          %s361 = smul.addr %s357, 128
          %s362 = scalar_lea.hbm %s2, %s361
          %s364 = sshll.u32 %s356, 4
          %s365 = int_to_ptr.vmem [resolvable:$true] %s364
          %367 = dma.hbm_to_vmem [thread:$0]  %s362, 256, %s365, %s353
        $region32: #{tpu_custom_call.1} parent=19 // pred_fallthru
          _
        // Predicated region
        $region33: #{tpu_custom_call.1} parent=19 // pred_check
          %p368 = pneg %p132
        $region34: #{tpu_custom_call.1} parent=19 // pred_check_branch
          %370 = sbr.rel (%p368) target = $region36
        $region35: #{tpu_custom_call.1} parent=19 // pred_region
          %s371 = sand.u32 %s34, 1
          %s372 = scalar_lea.sflag [#allocation9], %s371
          %s373 = sand.u32 %s122, 1
          %s374 = smul.addr %s373, 16
          %s375 = scalar_lea.vmem [#allocation8], %s374
          %s376 = smul.u32 2, %s34
          %s378 = ssub.s32 256, 256
          %379 = vsyncadd %s372, %s378
          %s380 = smul.addr %s376, 128
          %s381 = scalar_lea.hbm %s3, %s380
          %s383 = sshll.u32 %s375, 4
          %s384 = int_to_ptr.vmem [resolvable:$true] %s383
          %386 = dma.hbm_to_vmem [thread:$0]  %s381, 256, %s384, %s372
        $region36: #{tpu_custom_call.1} parent=19 // pred_fallthru
          _
        // Predicated region
        $region37: #{tpu_custom_call.1} parent=19 // pred_check
          %p387 = pneg %p158
        $region38: #{tpu_custom_call.1} parent=19 // pred_check_branch
          %389 = sbr.rel (%p387) target = $region40
        $region39: #{tpu_custom_call.1} parent=19 // pred_region
          %s390 = sand.u32 %s34, 1
          %s391 = scalar_lea.sflag [#allocation9], %s390
          %s392 = sand.u32 %s148, 1
          %s393 = smul.addr %s392, 16
          %s394 = scalar_lea.vmem [#allocation10], %s393
          %s395 = smul.u32 2, %s34
          %s397 = ssub.s32 256, 256
          %398 = vsyncadd %s391, %s397
          %s399 = smul.addr %s395, 128
          %s400 = scalar_lea.hbm %s4, %s399
          %s402 = sshll.u32 %s394, 4
          %s403 = int_to_ptr.vmem [resolvable:$true] %s402
          %405 = dma.hbm_to_vmem [thread:$0]  %s400, 256, %s403, %s391
        $region40: #{tpu_custom_call.1} parent=19 // pred_fallthru
          _
      $region20: #{tpu_custom_call.1} parent=5 // pred_fallthru
        _
      %p406 = scmp.le.s32.totalorder 1, %s34
      %p407 = scmp.lt.s32.totalorder %s34, 3
      %p408 = pnand %p406, %p407
      %p409 = pneg %p408
      // Predicated region
      $region41: #{tpu_custom_call.1} parent=5 // pred_check
        _
      $region42: #{tpu_custom_call.1} parent=5 // pred_check_branch
        %411 = sbr.rel (%p408) target = $region44
      $region43: #{tpu_custom_call.1} parent=5 // pred_region
        %s412 = ssub.s32 %s34, 1
        %s413 = sand.u32 %s47, 1
        %s414 = scalar_lea.sflag [#allocation3], %s413
        %s415 = sand.u32 %s47, 1
        %s416 = smul.addr %s415, 16
        %s417 = scalar_lea.vmem [#allocation2], %s416
        // Predicated region
        $region45: #{tpu_custom_call.1} parent=43 // pred_check
          %p418 = pneg %p60
        $region46: #{tpu_custom_call.1} parent=43 // pred_check_branch
          %420 = sbr.rel (%p418) target = $region48
        $region47: #{tpu_custom_call.1} parent=43 // pred_region
          %421 = dma.done %s414, 256
        $region48: #{tpu_custom_call.1} parent=43 // pred_fallthru
          _
        %s422 = sand.u32 %s39, 1
        %s423 = scalar_lea.sflag [#allocation6], %s422
        %s424 = sand.u32 %s73, 1
        %s425 = smul.addr %s424, 16
        %s426 = scalar_lea.vmem [#allocation5], %s425
        // Predicated region
        $region49: #{tpu_custom_call.1} parent=43 // pred_check
          %p427 = pneg %p86
        $region50: #{tpu_custom_call.1} parent=43 // pred_check_branch
          %429 = sbr.rel (%p427) target = $region52
        $region51: #{tpu_custom_call.1} parent=43 // pred_region
          %430 = dma.done %s423, 256
        $region52: #{tpu_custom_call.1} parent=43 // pred_fallthru
          _
        %s431 = sand.u32 %s39, 1
        %s432 = scalar_lea.sflag [#allocation6], %s431
        %s433 = sand.u32 %s99, 1
        %s434 = smul.addr %s433, 16
        %s435 = scalar_lea.vmem [#allocation7], %s434
        // Predicated region
        $region53: #{tpu_custom_call.1} parent=43 // pred_check
          %p436 = pneg %p112
        $region54: #{tpu_custom_call.1} parent=43 // pred_check_branch
          %438 = sbr.rel (%p436) target = $region56
        $region55: #{tpu_custom_call.1} parent=43 // pred_region
          %439 = dma.done %s432, 256
        $region56: #{tpu_custom_call.1} parent=43 // pred_fallthru
          _
        %s440 = sand.u32 %s39, 1
        %s441 = scalar_lea.sflag [#allocation9], %s440
        %s442 = sand.u32 %s125, 1
        %s443 = smul.addr %s442, 16
        %s444 = scalar_lea.vmem [#allocation8], %s443
        // Predicated region
        $region57: #{tpu_custom_call.1} parent=43 // pred_check
          %p445 = pneg %p138
        $region58: #{tpu_custom_call.1} parent=43 // pred_check_branch
          %447 = sbr.rel (%p445) target = $region60
        $region59: #{tpu_custom_call.1} parent=43 // pred_region
          %448 = dma.done %s441, 256
        $region60: #{tpu_custom_call.1} parent=43 // pred_fallthru
          _
        %s449 = sand.u32 %s39, 1
        %s450 = scalar_lea.sflag [#allocation9], %s449
        %s451 = sand.u32 %s151, 1
        %s452 = smul.addr %s451, 16
        %s453 = scalar_lea.vmem [#allocation10], %s452
        // Predicated region
        $region61: #{tpu_custom_call.1} parent=43 // pred_check
          %p454 = pneg %p164
        $region62: #{tpu_custom_call.1} parent=43 // pred_check_branch
          %456 = sbr.rel (%p454) target = $region64
        $region63: #{tpu_custom_call.1} parent=43 // pred_region
          %457 = dma.done %s450, 256
        $region64: #{tpu_custom_call.1} parent=43 // pred_fallthru
          _
        %s458 = sand.u32 %s47, 1
        %s459 = scalar_lea.sflag [#allocation3], %s458
        %s460 = sand.u32 %s47, 1
        %s461 = smul.addr %s460, 16
        %s462 = scalar_lea.vmem [#allocation2], %s461
        %p463 = pneg %p60
        %p464 = pneg %p57
        %s465 = sand.u32 %s39, 1
        %s466 = scalar_lea.sflag [#allocation6], %s465
        %s467 = sand.u32 %s73, 1
        %s468 = smul.addr %s467, 16
        %s469 = scalar_lea.vmem [#allocation5], %s468
        %p470 = pneg %p86
        %p471 = pneg %p83
        %s472 = sand.u32 %s39, 1
        %s473 = scalar_lea.sflag [#allocation6], %s472
        %s474 = sand.u32 %s99, 1
        %s475 = smul.addr %s474, 16
        %s476 = scalar_lea.vmem [#allocation7], %s475
        %p477 = pneg %p112
        %p478 = pneg %p109
        %s479 = sand.u32 %s39, 1
        %s480 = scalar_lea.sflag [#allocation9], %s479
        %s481 = sand.u32 %s125, 1
        %s482 = smul.addr %s481, 16
        %s483 = scalar_lea.vmem [#allocation8], %s482
        %p484 = pneg %p138
        %p485 = pneg %p135
        %s486 = sand.u32 %s39, 1
        %s487 = scalar_lea.sflag [#allocation9], %s486
        %s488 = sand.u32 %s151, 1
        %s489 = smul.addr %s488, 16
        %s490 = scalar_lea.vmem [#allocation10], %s489
        %p491 = pneg %p164
        %p492 = pneg %p161
        %p493 = pneg %p185
        %p494 = pneg %p182
        %p495 = pneg %p211
        %p496 = pneg %p208
        %s497 = sand.u32 %s198, 1
        %s498 = scalar_lea.sflag [#allocation4], %s497
        %s499 = sand.u32 %s198, 1
        %s500 = smul.addr %s499, 16
        %s501 = scalar_lea.vmem [#allocation11], %s500
        %p502 = pneg %p237
        %p503 = pneg %p234
        %s504 = sand.u32 %s39, 1
        %s505 = scalar_lea.sflag [#allocation13], %s504
        %s506 = sand.u32 %s224, 1
        %s507 = smul.addr %s506, 16
        %s508 = scalar_lea.vmem [#allocation12], %s507
        %p509 = pneg %p263
        %p510 = pneg %p260
        %s511 = sand.u32 %s39, 1
        %s512 = scalar_lea.sflag [#allocation13], %s511
        %s513 = sand.u32 %s250, 1
        %s514 = smul.addr %s513, 16
        %s515 = scalar_lea.vmem [#allocation14], %s514
        %p516 = pneg %p289
        %p517 = pneg %p286
        %s518 = sand.u32 %s276, 1
        %s519 = scalar_lea.sflag [#allocation16], %s518
        %s520 = sand.u32 %s276, 1
        %s521 = smul.addr %s520, 16
        %s522 = scalar_lea.vmem [#allocation15], %s521
        %s523 = smul.u32 2, %s39
        %s524 = smul.u32 2, %s39
        %s525 = smul.u32 2, %s39
        %s526 = smul.u32 2, %s39
        %s527 = smul.u32 2, %s39
        %s528 = smul.u32 2, %s39
        %s529 = smul.u32 2, %s39
        %s530 = smul.u32 2, %s39
        %s531 = smul.u32 2, %s39
        %v532 = vld [vmem:[%s417] sm:$0xff]
        %v533 = vld [vmem:[%s417 + $0x8] sm:$0xff]
        %v534 = vld [vmem:[%s426] sm:$0xff]
        %v535 = vld [vmem:[%s426 + $0x8] sm:$0xff]
        %v536 = vld [vmem:[%s435] sm:$0xff]
        %v537 = vld [vmem:[%s435 + $0x8] sm:$0xff]
        %v538 = vld [vmem:[%s444] sm:$0xff]
        %v539 = vld [vmem:[%s444 + $0x8] sm:$0xff]
        %v540 = vld [vmem:[%s453] sm:$0xff]
        %v541 = vld [vmem:[%s453 + $0x8] sm:$0xff]
        %v542 = vld [vmem:[%s5] sm:$0xff]
        %vm543 = vcmask 130048
        %v545 = vsel %vm543, %v542, 0
        %547 = vmatprep.subr.mxu0 0.0
        %548 = vmatpush1.msra.mxu0 0.0
        %549 = vmatprep.subr.mxu0 0.0
        %550 = vmatpush1.msra.mxu0 0.0
        %551 = vmatprep.subr.mxu0 0.0
        %552 = vmatpush1.msra.mxu0 0.0
        %553 = vmatprep.subr.mxu0 0.0
        %554 = vmatpush1.msra.mxu0 0.0
        %555 = vmatprep.subr.mxu0 0.0
        %556 = vmatpush1.msra.mxu0 0.0
        %557 = vmatprep.subr.mxu0 0.0
        %558 = vmatpush1.msra.mxu0 0.0
        %559 = vmatprep.subr.mxu0 0.0
        %560 = vmatpush1.msra.mxu0 0.0
        %561 = vmatprep.subr.mxu0 0.0
        %562 = vmatpush1.msra.mxu0 0.0
        %563 = vmatprep.subr.mxu0 0.0
        %564 = vmatpush1.msra.mxu0 0.0
        %565 = vmatprep.subr.mxu0 0.0
        %566 = vmatpush1.msra.mxu0 0.0
        %567 = vmatprep.subr.mxu0 0.0
        %568 = vmatpush1.msra.mxu0 0.0
        %569 = vmatprep.subr.mxu0 0.0
        %570 = vmatpush1.msra.mxu0 0.0
        %571 = vmatprep.subr.mxu0 0.0
        %572 = vmatpush1.msra.mxu0 0.0
        %573 = vmatprep.subr.mxu0 0.0
        %574 = vmatpush1.msra.mxu0 0.0
        %v575 = vand.u32 %v533, 4294901760
        %576 = vmatprep.subr.mxu0 %v575
        %v577 = vand.u32 %v532, 4294901760
        %578 = vmatpush1.msra.mxu0 %v577
        %v579 = vand.u32 %v535, 4294901760
        %580 = vmatprep.subr.mxu0 %v579
        %v581 = vand.u32 %v534, 4294901760
        %582 = vmatpush1.msra.mxu0 %v581
        %583 = vmatprep.subr.mxu0 0.0
        %584 = vmatpush2.msra.mxu0 0.0
        %585 = vmatprep.subr.mxu0 0.0
        %586 = vmatpush2.msra.mxu0 0.0
        %587 = vmatprep.subr.mxu0 0.0
        %588 = vmatpush2.msra.mxu0 0.0
        %589 = vmatprep.subr.mxu0 0.0
        %590 = vmatpush2.msra.mxu0 0.0
        %591 = vmatprep.subr.mxu0 0.0
        %592 = vmatpush2.msra.mxu0 0.0
        %593 = vmatprep.subr.mxu0 0.0
        %594 = vmatpush2.msra.mxu0 0.0
        %595 = vmatprep.subr.mxu0 0.0
        %596 = vmatpush2.msra.mxu0 0.0
        %597 = vmatprep.subr.mxu0 0.0
        %598 = vmatpush2.msra.mxu0 0.0
        %599 = vmatprep.subr.mxu0 0.0
        %600 = vmatpush2.msra.mxu0 0.0
        %601 = vmatprep.subr.mxu0 0.0
        %602 = vmatpush2.msra.mxu0 0.0
        %603 = vmatprep.subr.mxu0 0.0
        %604 = vmatpush2.msra.mxu0 0.0
        %605 = vmatprep.subr.mxu0 0.0
        %606 = vmatpush2.msra.mxu0 0.0
        %607 = vmatprep.subr.mxu0 0.0
        %608 = vmatpush2.msra.mxu0 0.0
        %609 = vmatprep.subr.mxu0 0.0
        %610 = vmatpush2.msra.mxu0 0.0
        %611 = vmatprep.subr.mxu0 0.0
        %612 = vmatpush2.msra.mxu0 0.0
        %613 = vmatprep.subr.mxu0 0.0
        %614 = vmatpush2.msra.mxu0 0.0
        %615 = vmatprep.mubr.f32.mxu0 0.0
        %v616 = vand.u32 %v545, 4294901760
        %v617 = vsub.f32 %v545, %v616
        %v618 = vand.u32 %v617, 4294901760
        %v619 = vsub.f32 %v617, %v618
        %v620 = vand.u32 %v619, 4294901760
        %621 = vmatmul.mubr.f32.gmra.mxu0 %v620
        %v622 = vpop.f32.mrf.mxu0
        %v623 = vadd.f32 0.0, %v622
        %v624 = vpop.f32.mrf.mxu0
        %v625 = vadd.f32 0.0, %v624
        %626 = vdwg.mxu0
        %627 = vmatprep.subr.mxu0 0.0
        %628 = vmatpush1.msra.mxu0 0.0
        %629 = vmatprep.subr.mxu0 0.0
        %630 = vmatpush1.msra.mxu0 0.0
        %631 = vmatprep.subr.mxu0 0.0
        %632 = vmatpush1.msra.mxu0 0.0
        %633 = vmatprep.subr.mxu0 0.0
        %634 = vmatpush1.msra.mxu0 0.0
        %635 = vmatprep.subr.mxu0 0.0
        %636 = vmatpush1.msra.mxu0 0.0
        %637 = vmatprep.subr.mxu0 0.0
        %638 = vmatpush1.msra.mxu0 0.0
        %639 = vmatprep.subr.mxu0 0.0
        %640 = vmatpush1.msra.mxu0 0.0
        %641 = vmatprep.subr.mxu0 0.0
        %642 = vmatpush1.msra.mxu0 0.0
        %643 = vmatprep.subr.mxu0 0.0
        %644 = vmatpush1.msra.mxu0 0.0
        %645 = vmatprep.subr.mxu0 0.0
        %646 = vmatpush1.msra.mxu0 0.0
        %647 = vmatprep.subr.mxu0 0.0
        %648 = vmatpush1.msra.mxu0 0.0
        %649 = vmatprep.subr.mxu0 0.0
        %650 = vmatpush1.msra.mxu0 0.0
        %651 = vmatprep.subr.mxu0 0.0
        %652 = vmatpush1.msra.mxu0 0.0
        %653 = vmatprep.subr.mxu0 0.0
        %654 = vmatpush1.msra.mxu0 0.0
        %v655 = vand.u32 %v533, 4294901760
        %v656 = vsub.f32 %v533, %v655
        %v657 = vand.u32 %v656, 4294901760
        %v658 = vsub.f32 %v656, %v657
        %v659 = vand.u32 %v658, 4294901760
        %660 = vmatprep.subr.mxu0 %v659
        %v661 = vand.u32 %v532, 4294901760
        %v662 = vsub.f32 %v532, %v661
        %v663 = vand.u32 %v662, 4294901760
        %v664 = vsub.f32 %v662, %v663
        %v665 = vand.u32 %v664, 4294901760
        %666 = vmatpush1.msra.mxu0 %v665
        %v667 = vand.u32 %v535, 4294901760
        %v668 = vsub.f32 %v535, %v667
        %v669 = vand.u32 %v668, 4294901760
        %v670 = vsub.f32 %v668, %v669
        %v671 = vand.u32 %v670, 4294901760
        %672 = vmatprep.subr.mxu0 %v671
        %v673 = vand.u32 %v534, 4294901760
        %v674 = vsub.f32 %v534, %v673
        %v675 = vand.u32 %v674, 4294901760
        %v676 = vsub.f32 %v674, %v675
        %v677 = vand.u32 %v676, 4294901760
        %678 = vmatpush1.msra.mxu0 %v677
        %679 = vmatprep.subr.mxu0 0.0
        %680 = vmatpush2.msra.mxu0 0.0
        %681 = vmatprep.subr.mxu0 0.0
        %682 = vmatpush2.msra.mxu0 0.0
        %683 = vmatprep.subr.mxu0 0.0
        %684 = vmatpush2.msra.mxu0 0.0
        %685 = vmatprep.subr.mxu0 0.0
        %686 = vmatpush2.msra.mxu0 0.0
        %687 = vmatprep.subr.mxu0 0.0
        %688 = vmatpush2.msra.mxu0 0.0
        %689 = vmatprep.subr.mxu0 0.0
        %690 = vmatpush2.msra.mxu0 0.0
        %691 = vmatprep.subr.mxu0 0.0
        %692 = vmatpush2.msra.mxu0 0.0
        %693 = vmatprep.subr.mxu0 0.0
        %694 = vmatpush2.msra.mxu0 0.0
        %695 = vmatprep.subr.mxu0 0.0
        %696 = vmatpush2.msra.mxu0 0.0
        %697 = vmatprep.subr.mxu0 0.0
        %698 = vmatpush2.msra.mxu0 0.0
        %699 = vmatprep.subr.mxu0 0.0
        %700 = vmatpush2.msra.mxu0 0.0
        %701 = vmatprep.subr.mxu0 0.0
        %702 = vmatpush2.msra.mxu0 0.0
        %703 = vmatprep.subr.mxu0 0.0
        %704 = vmatpush2.msra.mxu0 0.0
        %705 = vmatprep.subr.mxu0 0.0
        %706 = vmatpush2.msra.mxu0 0.0
        %707 = vmatprep.subr.mxu0 0.0
        %708 = vmatpush2.msra.mxu0 0.0
        %709 = vmatprep.subr.mxu0 0.0
        %710 = vmatpush2.msra.mxu0 0.0
        %711 = vmatprep.mubr.f32.mxu0 0.0
        %v712 = vand.u32 %v545, 4294901760
        %713 = vmatmul.mubr.f32.gmra.mxu0 %v712
        %v714 = vpop.f32.mrf.mxu0
        %v715 = vadd.f32 %v623, %v714
        %v716 = vpop.f32.mrf.mxu0
        %v717 = vadd.f32 %v625, %v716
        %718 = vdwg.mxu0
        %719 = vmatprep.subr.mxu0 0.0
        %720 = vmatpush1.msra.mxu0 0.0
        %721 = vmatprep.subr.mxu0 0.0
        %722 = vmatpush1.msra.mxu0 0.0
        %723 = vmatprep.subr.mxu0 0.0
        %724 = vmatpush1.msra.mxu0 0.0
        %725 = vmatprep.subr.mxu0 0.0
        %726 = vmatpush1.msra.mxu0 0.0
        %727 = vmatprep.subr.mxu0 0.0
        %728 = vmatpush1.msra.mxu0 0.0
        %729 = vmatprep.subr.mxu0 0.0
        %730 = vmatpush1.msra.mxu0 0.0
        %731 = vmatprep.subr.mxu0 0.0
        %732 = vmatpush1.msra.mxu0 0.0
        %733 = vmatprep.subr.mxu0 0.0
        %734 = vmatpush1.msra.mxu0 0.0
        %735 = vmatprep.subr.mxu0 0.0
        %736 = vmatpush1.msra.mxu0 0.0
        %737 = vmatprep.subr.mxu0 0.0
        %738 = vmatpush1.msra.mxu0 0.0
        %739 = vmatprep.subr.mxu0 0.0
        %740 = vmatpush1.msra.mxu0 0.0
        %741 = vmatprep.subr.mxu0 0.0
        %742 = vmatpush1.msra.mxu0 0.0
        %743 = vmatprep.subr.mxu0 0.0
        %744 = vmatpush1.msra.mxu0 0.0
        %745 = vmatprep.subr.mxu0 0.0
        %746 = vmatpush1.msra.mxu0 0.0
        %v747 = vand.u32 %v533, 4294901760
        %v748 = vsub.f32 %v533, %v747
        %749 = vmatprep.subr.mxu0 %v748
        %v750 = vand.u32 %v532, 4294901760
        %v751 = vsub.f32 %v532, %v750
        %752 = vmatpush1.msra.mxu0 %v751
        %v753 = vand.u32 %v535, 4294901760
        %v754 = vsub.f32 %v535, %v753
        %755 = vmatprep.subr.mxu0 %v754
        %v756 = vand.u32 %v534, 4294901760
        %v757 = vsub.f32 %v534, %v756
        %758 = vmatpush1.msra.mxu0 %v757
        %759 = vmatprep.subr.mxu0 0.0
        %760 = vmatpush2.msra.mxu0 0.0
        %761 = vmatprep.subr.mxu0 0.0
        %762 = vmatpush2.msra.mxu0 0.0
        %763 = vmatprep.subr.mxu0 0.0
        %764 = vmatpush2.msra.mxu0 0.0
        %765 = vmatprep.subr.mxu0 0.0
        %766 = vmatpush2.msra.mxu0 0.0
        %767 = vmatprep.subr.mxu0 0.0
        %768 = vmatpush2.msra.mxu0 0.0
        %769 = vmatprep.subr.mxu0 0.0
        %770 = vmatpush2.msra.mxu0 0.0
        %771 = vmatprep.subr.mxu0 0.0
        %772 = vmatpush2.msra.mxu0 0.0
        %773 = vmatprep.subr.mxu0 0.0
        %774 = vmatpush2.msra.mxu0 0.0
        %775 = vmatprep.subr.mxu0 0.0
        %776 = vmatpush2.msra.mxu0 0.0
        %777 = vmatprep.subr.mxu0 0.0
        %778 = vmatpush2.msra.mxu0 0.0
        %779 = vmatprep.subr.mxu0 0.0
        %780 = vmatpush2.msra.mxu0 0.0
        %781 = vmatprep.subr.mxu0 0.0
        %782 = vmatpush2.msra.mxu0 0.0
        %783 = vmatprep.subr.mxu0 0.0
        %784 = vmatpush2.msra.mxu0 0.0
        %785 = vmatprep.subr.mxu0 0.0
        %786 = vmatpush2.msra.mxu0 0.0
        %787 = vmatprep.subr.mxu0 0.0
        %788 = vmatpush2.msra.mxu0 0.0
        %789 = vmatprep.subr.mxu0 0.0
        %790 = vmatpush2.msra.mxu0 0.0
        %791 = vmatprep.mubr.f32.mxu0 0.0
        %v792 = vand.u32 %v545, 4294901760
        %v793 = vsub.f32 %v545, %v792
        %794 = vmatmul.mubr.f32.gmra.mxu0 %v793
        %v795 = vpop.f32.mrf.mxu0
        %v796 = vadd.f32 %v715, %v795
        %v797 = vpop.f32.mrf.mxu0
        %v798 = vadd.f32 %v717, %v797
        %799 = vdwg.mxu0
        %800 = vmatprep.subr.mxu0 0.0
        %801 = vmatpush1.msra.mxu0 0.0
        %802 = vmatprep.subr.mxu0 0.0
        %803 = vmatpush1.msra.mxu0 0.0
        %804 = vmatprep.subr.mxu0 0.0
        %805 = vmatpush1.msra.mxu0 0.0
        %806 = vmatprep.subr.mxu0 0.0
        %807 = vmatpush1.msra.mxu0 0.0
        %808 = vmatprep.subr.mxu0 0.0
        %809 = vmatpush1.msra.mxu0 0.0
        %810 = vmatprep.subr.mxu0 0.0
        %811 = vmatpush1.msra.mxu0 0.0
        %812 = vmatprep.subr.mxu0 0.0
        %813 = vmatpush1.msra.mxu0 0.0
        %814 = vmatprep.subr.mxu0 0.0
        %815 = vmatpush1.msra.mxu0 0.0
        %816 = vmatprep.subr.mxu0 0.0
        %817 = vmatpush1.msra.mxu0 0.0
        %818 = vmatprep.subr.mxu0 0.0
        %819 = vmatpush1.msra.mxu0 0.0
        %820 = vmatprep.subr.mxu0 0.0
        %821 = vmatpush1.msra.mxu0 0.0
        %822 = vmatprep.subr.mxu0 0.0
        %823 = vmatpush1.msra.mxu0 0.0
        %824 = vmatprep.subr.mxu0 0.0
        %825 = vmatpush1.msra.mxu0 0.0
        %826 = vmatprep.subr.mxu0 0.0
        %827 = vmatpush1.msra.mxu0 0.0
        %v828 = vand.u32 %v533, 4294901760
        %829 = vmatprep.subr.mxu0 %v828
        %v830 = vand.u32 %v532, 4294901760
        %831 = vmatpush1.msra.mxu0 %v830
        %v832 = vand.u32 %v535, 4294901760
        %833 = vmatprep.subr.mxu0 %v832
        %v834 = vand.u32 %v534, 4294901760
        %835 = vmatpush1.msra.mxu0 %v834
        %836 = vmatprep.subr.mxu0 0.0
        %837 = vmatpush2.msra.mxu0 0.0
        %838 = vmatprep.subr.mxu0 0.0
        %839 = vmatpush2.msra.mxu0 0.0
        %840 = vmatprep.subr.mxu0 0.0
        %841 = vmatpush2.msra.mxu0 0.0
        %842 = vmatprep.subr.mxu0 0.0
        %843 = vmatpush2.msra.mxu0 0.0
        %844 = vmatprep.subr.mxu0 0.0
        %845 = vmatpush2.msra.mxu0 0.0
        %846 = vmatprep.subr.mxu0 0.0
        %847 = vmatpush2.msra.mxu0 0.0
        %848 = vmatprep.subr.mxu0 0.0
        %849 = vmatpush2.msra.mxu0 0.0
        %850 = vmatprep.subr.mxu0 0.0
        %851 = vmatpush2.msra.mxu0 0.0
        %852 = vmatprep.subr.mxu0 0.0
        %853 = vmatpush2.msra.mxu0 0.0
        %854 = vmatprep.subr.mxu0 0.0
        %855 = vmatpush2.msra.mxu0 0.0
        %856 = vmatprep.subr.mxu0 0.0
        %857 = vmatpush2.msra.mxu0 0.0
        %858 = vmatprep.subr.mxu0 0.0
        %859 = vmatpush2.msra.mxu0 0.0
        %860 = vmatprep.subr.mxu0 0.0
        %861 = vmatpush2.msra.mxu0 0.0
        %862 = vmatprep.subr.mxu0 0.0
        %863 = vmatpush2.msra.mxu0 0.0
        %864 = vmatprep.subr.mxu0 0.0
        %865 = vmatpush2.msra.mxu0 0.0
        %866 = vmatprep.subr.mxu0 0.0
        %867 = vmatpush2.msra.mxu0 0.0
        %868 = vmatprep.mubr.f32.mxu0 0.0
        %v869 = vand.u32 %v545, 4294901760
        %v870 = vsub.f32 %v545, %v869
        %v871 = vand.u32 %v870, 4294901760
        %872 = vmatmul.mubr.f32.gmra.mxu0 %v871
        %v873 = vpop.f32.mrf.mxu0
        %v874 = vadd.f32 %v796, %v873
        %v875 = vpop.f32.mrf.mxu0
        %v876 = vadd.f32 %v798, %v875
        %877 = vdwg.mxu0
        %878 = vmatprep.subr.mxu0 0.0
        %879 = vmatpush1.msra.mxu0 0.0
        %880 = vmatprep.subr.mxu0 0.0
        %881 = vmatpush1.msra.mxu0 0.0
        %882 = vmatprep.subr.mxu0 0.0
        %883 = vmatpush1.msra.mxu0 0.0
        %884 = vmatprep.subr.mxu0 0.0
        %885 = vmatpush1.msra.mxu0 0.0
        %886 = vmatprep.subr.mxu0 0.0
        %887 = vmatpush1.msra.mxu0 0.0
        %888 = vmatprep.subr.mxu0 0.0
        %889 = vmatpush1.msra.mxu0 0.0
        %890 = vmatprep.subr.mxu0 0.0
        %891 = vmatpush1.msra.mxu0 0.0
        %892 = vmatprep.subr.mxu0 0.0
        %893 = vmatpush1.msra.mxu0 0.0
        %894 = vmatprep.subr.mxu0 0.0
        %895 = vmatpush1.msra.mxu0 0.0
        %896 = vmatprep.subr.mxu0 0.0
        %897 = vmatpush1.msra.mxu0 0.0
        %898 = vmatprep.subr.mxu0 0.0
        %899 = vmatpush1.msra.mxu0 0.0
        %900 = vmatprep.subr.mxu0 0.0
        %901 = vmatpush1.msra.mxu0 0.0
        %902 = vmatprep.subr.mxu0 0.0
        %903 = vmatpush1.msra.mxu0 0.0
        %904 = vmatprep.subr.mxu0 0.0
        %905 = vmatpush1.msra.mxu0 0.0
        %v906 = vand.u32 %v533, 4294901760
        %v907 = vsub.f32 %v533, %v906
        %v908 = vand.u32 %v907, 4294901760
        %909 = vmatprep.subr.mxu0 %v908
        %v910 = vand.u32 %v532, 4294901760
        %v911 = vsub.f32 %v532, %v910
        %v912 = vand.u32 %v911, 4294901760
        %913 = vmatpush1.msra.mxu0 %v912
        %v914 = vand.u32 %v535, 4294901760
        %v915 = vsub.f32 %v535, %v914
        %v916 = vand.u32 %v915, 4294901760
        %917 = vmatprep.subr.mxu0 %v916
        %v918 = vand.u32 %v534, 4294901760
        %v919 = vsub.f32 %v534, %v918
        %v920 = vand.u32 %v919, 4294901760
        %921 = vmatpush1.msra.mxu0 %v920
        %922 = vmatprep.subr.mxu0 0.0
        %923 = vmatpush2.msra.mxu0 0.0
        %924 = vmatprep.subr.mxu0 0.0
        %925 = vmatpush2.msra.mxu0 0.0
        %926 = vmatprep.subr.mxu0 0.0
        %927 = vmatpush2.msra.mxu0 0.0
        %928 = vmatprep.subr.mxu0 0.0
        %929 = vmatpush2.msra.mxu0 0.0
        %930 = vmatprep.subr.mxu0 0.0
        %931 = vmatpush2.msra.mxu0 0.0
        %932 = vmatprep.subr.mxu0 0.0
        %933 = vmatpush2.msra.mxu0 0.0
        %934 = vmatprep.subr.mxu0 0.0
        %935 = vmatpush2.msra.mxu0 0.0
        %936 = vmatprep.subr.mxu0 0.0
        %937 = vmatpush2.msra.mxu0 0.0
        %938 = vmatprep.subr.mxu0 0.0
        %939 = vmatpush2.msra.mxu0 0.0
        %940 = vmatprep.subr.mxu0 0.0
        %941 = vmatpush2.msra.mxu0 0.0
        %942 = vmatprep.subr.mxu0 0.0
        %943 = vmatpush2.msra.mxu0 0.0
        %944 = vmatprep.subr.mxu0 0.0
        %945 = vmatpush2.msra.mxu0 0.0
        %946 = vmatprep.subr.mxu0 0.0
        %947 = vmatpush2.msra.mxu0 0.0
        %948 = vmatprep.subr.mxu0 0.0
        %949 = vmatpush2.msra.mxu0 0.0
        %950 = vmatprep.subr.mxu0 0.0
        %951 = vmatpush2.msra.mxu0 0.0
        %952 = vmatprep.subr.mxu0 0.0
        %953 = vmatpush2.msra.mxu0 0.0
        %954 = vmatprep.mubr.f32.mxu0 0.0
        %v955 = vand.u32 %v545, 4294901760
        %956 = vmatmul.mubr.f32.gmra.mxu0 %v955
        %v957 = vpop.f32.mrf.mxu0
        %v958 = vadd.f32 %v874, %v957
        %v959 = vpop.f32.mrf.mxu0
        %v960 = vadd.f32 %v876, %v959
        %961 = vdwg.mxu0
        %962 = vmatprep.subr.mxu0 0.0
        %963 = vmatpush1.msra.mxu0 0.0
        %964 = vmatprep.subr.mxu0 0.0
        %965 = vmatpush1.msra.mxu0 0.0
        %966 = vmatprep.subr.mxu0 0.0
        %967 = vmatpush1.msra.mxu0 0.0
        %968 = vmatprep.subr.mxu0 0.0
        %969 = vmatpush1.msra.mxu0 0.0
        %970 = vmatprep.subr.mxu0 0.0
        %971 = vmatpush1.msra.mxu0 0.0
        %972 = vmatprep.subr.mxu0 0.0
        %973 = vmatpush1.msra.mxu0 0.0
        %974 = vmatprep.subr.mxu0 0.0
        %975 = vmatpush1.msra.mxu0 0.0
        %976 = vmatprep.subr.mxu0 0.0
        %977 = vmatpush1.msra.mxu0 0.0
        %978 = vmatprep.subr.mxu0 0.0
        %979 = vmatpush1.msra.mxu0 0.0
        %980 = vmatprep.subr.mxu0 0.0
        %981 = vmatpush1.msra.mxu0 0.0
        %982 = vmatprep.subr.mxu0 0.0
        %983 = vmatpush1.msra.mxu0 0.0
        %984 = vmatprep.subr.mxu0 0.0
        %985 = vmatpush1.msra.mxu0 0.0
        %986 = vmatprep.subr.mxu0 0.0
        %987 = vmatpush1.msra.mxu0 0.0
        %988 = vmatprep.subr.mxu0 0.0
        %989 = vmatpush1.msra.mxu0 0.0
        %v990 = vand.u32 %v533, 4294901760
        %991 = vmatprep.subr.mxu0 %v990
        %v992 = vand.u32 %v532, 4294901760
        %993 = vmatpush1.msra.mxu0 %v992
        %v994 = vand.u32 %v535, 4294901760
        %995 = vmatprep.subr.mxu0 %v994
        %v996 = vand.u32 %v534, 4294901760
        %997 = vmatpush1.msra.mxu0 %v996
        %998 = vmatprep.subr.mxu0 0.0
        %999 = vmatpush2.msra.mxu0 0.0
        %1000 = vmatprep.subr.mxu0 0.0
        %1001 = vmatpush2.msra.mxu0 0.0
        %1002 = vmatprep.subr.mxu0 0.0
        %1003 = vmatpush2.msra.mxu0 0.0
        %1004 = vmatprep.subr.mxu0 0.0
        %1005 = vmatpush2.msra.mxu0 0.0
        %1006 = vmatprep.subr.mxu0 0.0
        %1007 = vmatpush2.msra.mxu0 0.0
        %1008 = vmatprep.subr.mxu0 0.0
        %1009 = vmatpush2.msra.mxu0 0.0
        %1010 = vmatprep.subr.mxu0 0.0
        %1011 = vmatpush2.msra.mxu0 0.0
        %1012 = vmatprep.subr.mxu0 0.0
        %1013 = vmatpush2.msra.mxu0 0.0
        %1014 = vmatprep.subr.mxu0 0.0
        %1015 = vmatpush2.msra.mxu0 0.0
        %1016 = vmatprep.subr.mxu0 0.0
        %1017 = vmatpush2.msra.mxu0 0.0
        %1018 = vmatprep.subr.mxu0 0.0
        %1019 = vmatpush2.msra.mxu0 0.0
        %1020 = vmatprep.subr.mxu0 0.0
        %1021 = vmatpush2.msra.mxu0 0.0
        %1022 = vmatprep.subr.mxu0 0.0
        %1023 = vmatpush2.msra.mxu0 0.0
        %1024 = vmatprep.subr.mxu0 0.0
        %1025 = vmatpush2.msra.mxu0 0.0
        %1026 = vmatprep.subr.mxu0 0.0
        %1027 = vmatpush2.msra.mxu0 0.0
        %1028 = vmatprep.subr.mxu0 0.0
        %1029 = vmatpush2.msra.mxu0 0.0
        %1030 = vmatprep.mubr.f32.mxu0 0.0
        %v1031 = vand.u32 %v545, 4294901760
        %1032 = vmatmul.mubr.f32.gmra.mxu0 %v1031
        %v1033 = vpop.f32.mrf.mxu0
        %v1034 = vadd.f32 %v958, %v1033
        %v1035 = vpop.f32.mrf.mxu0
        %v1036 = vadd.f32 %v960, %v1035
        %1037 = vdwg.mxu0
        %v1038 = vmul.f32 %v538, 0.99202794
        %v1039 = vmul.f32 %v539, 0.99202794
        %v1040 = vmul.f32 %v1034, 0.001
        %v1041 = vmul.f32 %v1036, 0.001
        %v1042 = vadd.f32 %v1038, %v1040
        %v1043 = vadd.f32 %v1039, %v1041
        %v1044 = vrot.slane %v1042, 7
        %v1045 = vrot.slane %v1043, 7
        %s1046 = scalar_lea.vmem %s444, 7 [#allocation8]
        %v1047 = vld [vmem:[%s1046] ss:$8 sm:$0x3]
        %v1049 = vlaneseq
        %v1050 = vshrl.u32 %v1049, 7
        %v1051 = vsub.s32 0, %v1050
        %v1052 = vrot.slane %v1047, %v1051
        %v1053 = vlaneseq
        %v1054 = vshrl.u32 %v1053, 7
        %v1055 = vsub.s32 1, %v1054
        %v1056 = vrot.slane %v1047, %v1055
        %v1059 = vlaneseq
        %v1060 = vshrl.u32 %v1059, 7
        %vm1061 = vcmp.eq.s32.totalorder %v1060, 0
        %v1062 = vsel %vm1061, %v1052, %v1044
        %v1063 = vsel %vm1061, %v1056, %v1045
        %v1064 = vsub.f32 %v532, %v1062
        %v1065 = vsub.f32 %v533, %v1063
        %v1066 = vmul.f32 %v1064, 0.999
        %v1067 = vmul.f32 %v1065, 0.999
        %v1068 = vmul.f32 %v1066, %v1064
        %v1069 = vmul.f32 %v1067, %v1065
        %1070 = vmatprep.subr.mxu0 0.0
        %1071 = vmatpush1.msra.mxu0 0.0
        %1072 = vmatprep.subr.mxu0 0.0
        %1073 = vmatpush1.msra.mxu0 0.0
        %1074 = vmatprep.subr.mxu0 0.0
        %1075 = vmatpush1.msra.mxu0 0.0
        %1076 = vmatprep.subr.mxu0 0.0
        %1077 = vmatpush1.msra.mxu0 0.0
        %1078 = vmatprep.subr.mxu0 0.0
        %1079 = vmatpush1.msra.mxu0 0.0
        %1080 = vmatprep.subr.mxu0 0.0
        %1081 = vmatpush1.msra.mxu0 0.0
        %1082 = vmatprep.subr.mxu0 0.0
        %1083 = vmatpush1.msra.mxu0 0.0
        %1084 = vmatprep.subr.mxu0 0.0
        %1085 = vmatpush1.msra.mxu0 0.0
        %1086 = vmatprep.subr.mxu0 0.0
        %1087 = vmatpush1.msra.mxu0 0.0
        %1088 = vmatprep.subr.mxu0 0.0
        %1089 = vmatpush1.msra.mxu0 0.0
        %1090 = vmatprep.subr.mxu0 0.0
        %1091 = vmatpush1.msra.mxu0 0.0
        %1092 = vmatprep.subr.mxu0 0.0
        %1093 = vmatpush1.msra.mxu0 0.0
        %1094 = vmatprep.subr.mxu0 0.0
        %1095 = vmatpush1.msra.mxu0 0.0
        %1096 = vmatprep.subr.mxu0 0.0
        %1097 = vmatpush1.msra.mxu0 0.0
        %v1098 = vand.u32 %v1069, 4294901760
        %1099 = vmatprep.subr.mxu0 %v1098
        %v1100 = vand.u32 %v1068, 4294901760
        %1101 = vmatpush1.msra.mxu0 %v1100
        %v1102 = vand.u32 %v537, 4294901760
        %1103 = vmatprep.subr.mxu0 %v1102
        %v1104 = vand.u32 %v536, 4294901760
        %1105 = vmatpush1.msra.mxu0 %v1104
        %1106 = vmatprep.subr.mxu0 0.0
        %1107 = vmatpush2.msra.mxu0 0.0
        %1108 = vmatprep.subr.mxu0 0.0
        %1109 = vmatpush2.msra.mxu0 0.0
        %1110 = vmatprep.subr.mxu0 0.0
        %1111 = vmatpush2.msra.mxu0 0.0
        %1112 = vmatprep.subr.mxu0 0.0
        %1113 = vmatpush2.msra.mxu0 0.0
        %1114 = vmatprep.subr.mxu0 0.0
        %1115 = vmatpush2.msra.mxu0 0.0
        %1116 = vmatprep.subr.mxu0 0.0
        %1117 = vmatpush2.msra.mxu0 0.0
        %1118 = vmatprep.subr.mxu0 0.0
        %1119 = vmatpush2.msra.mxu0 0.0
        %1120 = vmatprep.subr.mxu0 0.0
        %1121 = vmatpush2.msra.mxu0 0.0
        %1122 = vmatprep.subr.mxu0 0.0
        %1123 = vmatpush2.msra.mxu0 0.0
        %1124 = vmatprep.subr.mxu0 0.0
        %1125 = vmatpush2.msra.mxu0 0.0
        %1126 = vmatprep.subr.mxu0 0.0
        %1127 = vmatpush2.msra.mxu0 0.0
        %1128 = vmatprep.subr.mxu0 0.0
        %1129 = vmatpush2.msra.mxu0 0.0
        %1130 = vmatprep.subr.mxu0 0.0
        %1131 = vmatpush2.msra.mxu0 0.0
        %1132 = vmatprep.subr.mxu0 0.0
        %1133 = vmatpush2.msra.mxu0 0.0
        %1134 = vmatprep.subr.mxu0 0.0
        %1135 = vmatpush2.msra.mxu0 0.0
        %1136 = vmatprep.subr.mxu0 0.0
        %1137 = vmatpush2.msra.mxu0 0.0
        %1138 = vmatprep.mubr.f32.mxu0 0.0
        %v1139 = vand.u32 %v545, 4294901760
        %v1140 = vsub.f32 %v545, %v1139
        %v1141 = vand.u32 %v1140, 4294901760
        %v1142 = vsub.f32 %v1140, %v1141
        %v1143 = vand.u32 %v1142, 4294901760
        %1144 = vmatmul.mubr.f32.gmra.mxu0 %v1143
        %v1145 = vpop.f32.mrf.mxu0
        %v1146 = vadd.f32 0.0, %v1145
        %v1147 = vpop.f32.mrf.mxu0
        %v1148 = vadd.f32 0.0, %v1147
        %1149 = vdwg.mxu0
        %1150 = vmatprep.subr.mxu0 0.0
        %1151 = vmatpush1.msra.mxu0 0.0
        %1152 = vmatprep.subr.mxu0 0.0
        %1153 = vmatpush1.msra.mxu0 0.0
        %1154 = vmatprep.subr.mxu0 0.0
        %1155 = vmatpush1.msra.mxu0 0.0
        %1156 = vmatprep.subr.mxu0 0.0
        %1157 = vmatpush1.msra.mxu0 0.0
        %1158 = vmatprep.subr.mxu0 0.0
        %1159 = vmatpush1.msra.mxu0 0.0
        %1160 = vmatprep.subr.mxu0 0.0
        %1161 = vmatpush1.msra.mxu0 0.0
        %1162 = vmatprep.subr.mxu0 0.0
        %1163 = vmatpush1.msra.mxu0 0.0
        %1164 = vmatprep.subr.mxu0 0.0
        %1165 = vmatpush1.msra.mxu0 0.0
        %1166 = vmatprep.subr.mxu0 0.0
        %1167 = vmatpush1.msra.mxu0 0.0
        %1168 = vmatprep.subr.mxu0 0.0
        %1169 = vmatpush1.msra.mxu0 0.0
        %1170 = vmatprep.subr.mxu0 0.0
        %1171 = vmatpush1.msra.mxu0 0.0
        %1172 = vmatprep.subr.mxu0 0.0
        %1173 = vmatpush1.msra.mxu0 0.0
        %1174 = vmatprep.subr.mxu0 0.0
        %1175 = vmatpush1.msra.mxu0 0.0
        %1176 = vmatprep.subr.mxu0 0.0
        %1177 = vmatpush1.msra.mxu0 0.0
        %v1178 = vand.u32 %v1069, 4294901760
        %v1179 = vsub.f32 %v1069, %v1178
        %v1180 = vand.u32 %v1179, 4294901760
        %v1181 = vsub.f32 %v1179, %v1180
        %v1182 = vand.u32 %v1181, 4294901760
        %1183 = vmatprep.subr.mxu0 %v1182
        %v1184 = vand.u32 %v1068, 4294901760
        %v1185 = vsub.f32 %v1068, %v1184
        %v1186 = vand.u32 %v1185, 4294901760
        %v1187 = vsub.f32 %v1185, %v1186
        %v1188 = vand.u32 %v1187, 4294901760
        %1189 = vmatpush1.msra.mxu0 %v1188
        %v1190 = vand.u32 %v537, 4294901760
        %v1191 = vsub.f32 %v537, %v1190
        %v1192 = vand.u32 %v1191, 4294901760
        %v1193 = vsub.f32 %v1191, %v1192
        %v1194 = vand.u32 %v1193, 4294901760
        %1195 = vmatprep.subr.mxu0 %v1194
        %v1196 = vand.u32 %v536, 4294901760
        %v1197 = vsub.f32 %v536, %v1196
        %v1198 = vand.u32 %v1197, 4294901760
        %v1199 = vsub.f32 %v1197, %v1198
        %v1200 = vand.u32 %v1199, 4294901760
        %1201 = vmatpush1.msra.mxu0 %v1200
        %1202 = vmatprep.subr.mxu0 0.0
        %1203 = vmatpush2.msra.mxu0 0.0
        %1204 = vmatprep.subr.mxu0 0.0
        %1205 = vmatpush2.msra.mxu0 0.0
        %1206 = vmatprep.subr.mxu0 0.0
        %1207 = vmatpush2.msra.mxu0 0.0
        %1208 = vmatprep.subr.mxu0 0.0
        %1209 = vmatpush2.msra.mxu0 0.0
        %1210 = vmatprep.subr.mxu0 0.0
        %1211 = vmatpush2.msra.mxu0 0.0
        %1212 = vmatprep.subr.mxu0 0.0
        %1213 = vmatpush2.msra.mxu0 0.0
        %1214 = vmatprep.subr.mxu0 0.0
        %1215 = vmatpush2.msra.mxu0 0.0
        %1216 = vmatprep.subr.mxu0 0.0
        %1217 = vmatpush2.msra.mxu0 0.0
        %1218 = vmatprep.subr.mxu0 0.0
        %1219 = vmatpush2.msra.mxu0 0.0
        %1220 = vmatprep.subr.mxu0 0.0
        %1221 = vmatpush2.msra.mxu0 0.0
        %1222 = vmatprep.subr.mxu0 0.0
        %1223 = vmatpush2.msra.mxu0 0.0
        %1224 = vmatprep.subr.mxu0 0.0
        %1225 = vmatpush2.msra.mxu0 0.0
        %1226 = vmatprep.subr.mxu0 0.0
        %1227 = vmatpush2.msra.mxu0 0.0
        %1228 = vmatprep.subr.mxu0 0.0
        %1229 = vmatpush2.msra.mxu0 0.0
        %1230 = vmatprep.subr.mxu0 0.0
        %1231 = vmatpush2.msra.mxu0 0.0
        %1232 = vmatprep.subr.mxu0 0.0
        %1233 = vmatpush2.msra.mxu0 0.0
        %1234 = vmatprep.mubr.f32.mxu0 0.0
        %v1235 = vand.u32 %v545, 4294901760
        %1236 = vmatmul.mubr.f32.gmra.mxu0 %v1235
        %v1237 = vpop.f32.mrf.mxu0
        %v1238 = vadd.f32 %v1146, %v1237
        %v1239 = vpop.f32.mrf.mxu0
        %v1240 = vadd.f32 %v1148, %v1239
        %1241 = vdwg.mxu0
        %1242 = vmatprep.subr.mxu0 0.0
        %1243 = vmatpush1.msra.mxu0 0.0
        %1244 = vmatprep.subr.mxu0 0.0
        %1245 = vmatpush1.msra.mxu0 0.0
        %1246 = vmatprep.subr.mxu0 0.0
        %1247 = vmatpush1.msra.mxu0 0.0
        %1248 = vmatprep.subr.mxu0 0.0
        %1249 = vmatpush1.msra.mxu0 0.0
        %1250 = vmatprep.subr.mxu0 0.0
        %1251 = vmatpush1.msra.mxu0 0.0
        %1252 = vmatprep.subr.mxu0 0.0
        %1253 = vmatpush1.msra.mxu0 0.0
        %1254 = vmatprep.subr.mxu0 0.0
        %1255 = vmatpush1.msra.mxu0 0.0
        %1256 = vmatprep.subr.mxu0 0.0
        %1257 = vmatpush1.msra.mxu0 0.0
        %1258 = vmatprep.subr.mxu0 0.0
        %1259 = vmatpush1.msra.mxu0 0.0
        %1260 = vmatprep.subr.mxu0 0.0
        %1261 = vmatpush1.msra.mxu0 0.0
        %1262 = vmatprep.subr.mxu0 0.0
        %1263 = vmatpush1.msra.mxu0 0.0
        %1264 = vmatprep.subr.mxu0 0.0
        %1265 = vmatpush1.msra.mxu0 0.0
        %1266 = vmatprep.subr.mxu0 0.0
        %1267 = vmatpush1.msra.mxu0 0.0
        %1268 = vmatprep.subr.mxu0 0.0
        %1269 = vmatpush1.msra.mxu0 0.0
        %v1270 = vand.u32 %v1069, 4294901760
        %v1271 = vsub.f32 %v1069, %v1270
        %1272 = vmatprep.subr.mxu0 %v1271
        %v1273 = vand.u32 %v1068, 4294901760
        %v1274 = vsub.f32 %v1068, %v1273
        %1275 = vmatpush1.msra.mxu0 %v1274
        %v1276 = vand.u32 %v537, 4294901760
        %v1277 = vsub.f32 %v537, %v1276
        %1278 = vmatprep.subr.mxu0 %v1277
        %v1279 = vand.u32 %v536, 4294901760
        %v1280 = vsub.f32 %v536, %v1279
        %1281 = vmatpush1.msra.mxu0 %v1280
        %1282 = vmatprep.subr.mxu0 0.0
        %1283 = vmatpush2.msra.mxu0 0.0
        %1284 = vmatprep.subr.mxu0 0.0
        %1285 = vmatpush2.msra.mxu0 0.0
        %1286 = vmatprep.subr.mxu0 0.0
        %1287 = vmatpush2.msra.mxu0 0.0
        %1288 = vmatprep.subr.mxu0 0.0
        %1289 = vmatpush2.msra.mxu0 0.0
        %1290 = vmatprep.subr.mxu0 0.0
        %1291 = vmatpush2.msra.mxu0 0.0
        %1292 = vmatprep.subr.mxu0 0.0
        %1293 = vmatpush2.msra.mxu0 0.0
        %1294 = vmatprep.subr.mxu0 0.0
        %1295 = vmatpush2.msra.mxu0 0.0
        %1296 = vmatprep.subr.mxu0 0.0
        %1297 = vmatpush2.msra.mxu0 0.0
        %1298 = vmatprep.subr.mxu0 0.0
        %1299 = vmatpush2.msra.mxu0 0.0
        %1300 = vmatprep.subr.mxu0 0.0
        %1301 = vmatpush2.msra.mxu0 0.0
        %1302 = vmatprep.subr.mxu0 0.0
        %1303 = vmatpush2.msra.mxu0 0.0
        %1304 = vmatprep.subr.mxu0 0.0
        %1305 = vmatpush2.msra.mxu0 0.0
        %1306 = vmatprep.subr.mxu0 0.0
        %1307 = vmatpush2.msra.mxu0 0.0
        %1308 = vmatprep.subr.mxu0 0.0
        %1309 = vmatpush2.msra.mxu0 0.0
        %1310 = vmatprep.subr.mxu0 0.0
        %1311 = vmatpush2.msra.mxu0 0.0
        %1312 = vmatprep.subr.mxu0 0.0
        %1313 = vmatpush2.msra.mxu0 0.0
        %1314 = vmatprep.mubr.f32.mxu0 0.0
        %v1315 = vand.u32 %v545, 4294901760
        %v1316 = vsub.f32 %v545, %v1315
        %1317 = vmatmul.mubr.f32.gmra.mxu0 %v1316
        %v1318 = vpop.f32.mrf.mxu0
        %v1319 = vadd.f32 %v1238, %v1318
        %v1320 = vpop.f32.mrf.mxu0
        %v1321 = vadd.f32 %v1240, %v1320
        %1322 = vdwg.mxu0
        %1323 = vmatprep.subr.mxu0 0.0
        %1324 = vmatpush1.msra.mxu0 0.0
        %1325 = vmatprep.subr.mxu0 0.0
        %1326 = vmatpush1.msra.mxu0 0.0
        %1327 = vmatprep.subr.mxu0 0.0
        %1328 = vmatpush1.msra.mxu0 0.0
        %1329 = vmatprep.subr.mxu0 0.0
        %1330 = vmatpush1.msra.mxu0 0.0
        %1331 = vmatprep.subr.mxu0 0.0
        %1332 = vmatpush1.msra.mxu0 0.0
        %1333 = vmatprep.subr.mxu0 0.0
        %1334 = vmatpush1.msra.mxu0 0.0
        %1335 = vmatprep.subr.mxu0 0.0
        %1336 = vmatpush1.msra.mxu0 0.0
        %1337 = vmatprep.subr.mxu0 0.0
        %1338 = vmatpush1.msra.mxu0 0.0
        %1339 = vmatprep.subr.mxu0 0.0
        %1340 = vmatpush1.msra.mxu0 0.0
        %1341 = vmatprep.subr.mxu0 0.0
        %1342 = vmatpush1.msra.mxu0 0.0
        %1343 = vmatprep.subr.mxu0 0.0
        %1344 = vmatpush1.msra.mxu0 0.0
        %1345 = vmatprep.subr.mxu0 0.0
        %1346 = vmatpush1.msra.mxu0 0.0
        %1347 = vmatprep.subr.mxu0 0.0
        %1348 = vmatpush1.msra.mxu0 0.0
        %1349 = vmatprep.subr.mxu0 0.0
        %1350 = vmatpush1.msra.mxu0 0.0
        %v1351 = vand.u32 %v1069, 4294901760
        %1352 = vmatprep.subr.mxu0 %v1351
        %v1353 = vand.u32 %v1068, 4294901760
        %1354 = vmatpush1.msra.mxu0 %v1353
        %v1355 = vand.u32 %v537, 4294901760
        %1356 = vmatprep.subr.mxu0 %v1355
        %v1357 = vand.u32 %v536, 4294901760
        %1358 = vmatpush1.msra.mxu0 %v1357
        %1359 = vmatprep.subr.mxu0 0.0
        %1360 = vmatpush2.msra.mxu0 0.0
        %1361 = vmatprep.subr.mxu0 0.0
        %1362 = vmatpush2.msra.mxu0 0.0
        %1363 = vmatprep.subr.mxu0 0.0
        %1364 = vmatpush2.msra.mxu0 0.0
        %1365 = vmatprep.subr.mxu0 0.0
        %1366 = vmatpush2.msra.mxu0 0.0
        %1367 = vmatprep.subr.mxu0 0.0
        %1368 = vmatpush2.msra.mxu0 0.0
        %1369 = vmatprep.subr.mxu0 0.0
        %1370 = vmatpush2.msra.mxu0 0.0
        %1371 = vmatprep.subr.mxu0 0.0
        %1372 = vmatpush2.msra.mxu0 0.0
        %1373 = vmatprep.subr.mxu0 0.0
        %1374 = vmatpush2.msra.mxu0 0.0
        %1375 = vmatprep.subr.mxu0 0.0
        %1376 = vmatpush2.msra.mxu0 0.0
        %1377 = vmatprep.subr.mxu0 0.0
        %1378 = vmatpush2.msra.mxu0 0.0
        %1379 = vmatprep.subr.mxu0 0.0
        %1380 = vmatpush2.msra.mxu0 0.0
        %1381 = vmatprep.subr.mxu0 0.0
        %1382 = vmatpush2.msra.mxu0 0.0
        %1383 = vmatprep.subr.mxu0 0.0
        %1384 = vmatpush2.msra.mxu0 0.0
        %1385 = vmatprep.subr.mxu0 0.0
        %1386 = vmatpush2.msra.mxu0 0.0
        %1387 = vmatprep.subr.mxu0 0.0
        %1388 = vmatpush2.msra.mxu0 0.0
        %1389 = vmatprep.subr.mxu0 0.0
        %1390 = vmatpush2.msra.mxu0 0.0
        %1391 = vmatprep.mubr.f32.mxu0 0.0
        %v1392 = vand.u32 %v545, 4294901760
        %v1393 = vsub.f32 %v545, %v1392
        %v1394 = vand.u32 %v1393, 4294901760
        %1395 = vmatmul.mubr.f32.gmra.mxu0 %v1394
        %v1396 = vpop.f32.mrf.mxu0
        %v1397 = vadd.f32 %v1319, %v1396
        %v1398 = vpop.f32.mrf.mxu0
        %v1399 = vadd.f32 %v1321, %v1398
        %1400 = vdwg.mxu0
        %1401 = vmatprep.subr.mxu0 0.0
        %1402 = vmatpush1.msra.mxu0 0.0
        %1403 = vmatprep.subr.mxu0 0.0
        %1404 = vmatpush1.msra.mxu0 0.0
        %1405 = vmatprep.subr.mxu0 0.0
        %1406 = vmatpush1.msra.mxu0 0.0
        %1407 = vmatprep.subr.mxu0 0.0
        %1408 = vmatpush1.msra.mxu0 0.0
        %1409 = vmatprep.subr.mxu0 0.0
        %1410 = vmatpush1.msra.mxu0 0.0
        %1411 = vmatprep.subr.mxu0 0.0
        %1412 = vmatpush1.msra.mxu0 0.0
        %1413 = vmatprep.subr.mxu0 0.0
        %1414 = vmatpush1.msra.mxu0 0.0
        %1415 = vmatprep.subr.mxu0 0.0
        %1416 = vmatpush1.msra.mxu0 0.0
        %1417 = vmatprep.subr.mxu0 0.0
        %1418 = vmatpush1.msra.mxu0 0.0
        %1419 = vmatprep.subr.mxu0 0.0
        %1420 = vmatpush1.msra.mxu0 0.0
        %1421 = vmatprep.subr.mxu0 0.0
        %1422 = vmatpush1.msra.mxu0 0.0
        %1423 = vmatprep.subr.mxu0 0.0
        %1424 = vmatpush1.msra.mxu0 0.0
        %1425 = vmatprep.subr.mxu0 0.0
        %1426 = vmatpush1.msra.mxu0 0.0
        %1427 = vmatprep.subr.mxu0 0.0
        %1428 = vmatpush1.msra.mxu0 0.0
        %v1429 = vand.u32 %v1069, 4294901760
        %v1430 = vsub.f32 %v1069, %v1429
        %v1431 = vand.u32 %v1430, 4294901760
        %1432 = vmatprep.subr.mxu0 %v1431
        %v1433 = vand.u32 %v1068, 4294901760
        %v1434 = vsub.f32 %v1068, %v1433
        %v1435 = vand.u32 %v1434, 4294901760
        %1436 = vmatpush1.msra.mxu0 %v1435
        %v1437 = vand.u32 %v537, 4294901760
        %v1438 = vsub.f32 %v537, %v1437
        %v1439 = vand.u32 %v1438, 4294901760
        %1440 = vmatprep.subr.mxu0 %v1439
        %v1441 = vand.u32 %v536, 4294901760
        %v1442 = vsub.f32 %v536, %v1441
        %v1443 = vand.u32 %v1442, 4294901760
        %1444 = vmatpush1.msra.mxu0 %v1443
        %1445 = vmatprep.subr.mxu0 0.0
        %1446 = vmatpush2.msra.mxu0 0.0
        %1447 = vmatprep.subr.mxu0 0.0
        %1448 = vmatpush2.msra.mxu0 0.0
        %1449 = vmatprep.subr.mxu0 0.0
        %1450 = vmatpush2.msra.mxu0 0.0
        %1451 = vmatprep.subr.mxu0 0.0
        %1452 = vmatpush2.msra.mxu0 0.0
        %1453 = vmatprep.subr.mxu0 0.0
        %1454 = vmatpush2.msra.mxu0 0.0
        %1455 = vmatprep.subr.mxu0 0.0
        %1456 = vmatpush2.msra.mxu0 0.0
        %1457 = vmatprep.subr.mxu0 0.0
        %1458 = vmatpush2.msra.mxu0 0.0
        %1459 = vmatprep.subr.mxu0 0.0
        %1460 = vmatpush2.msra.mxu0 0.0
        %1461 = vmatprep.subr.mxu0 0.0
        %1462 = vmatpush2.msra.mxu0 0.0
        %1463 = vmatprep.subr.mxu0 0.0
        %1464 = vmatpush2.msra.mxu0 0.0
        %1465 = vmatprep.subr.mxu0 0.0
        %1466 = vmatpush2.msra.mxu0 0.0
        %1467 = vmatprep.subr.mxu0 0.0
        %1468 = vmatpush2.msra.mxu0 0.0
        %1469 = vmatprep.subr.mxu0 0.0
        %1470 = vmatpush2.msra.mxu0 0.0
        %1471 = vmatprep.subr.mxu0 0.0
        %1472 = vmatpush2.msra.mxu0 0.0
        %1473 = vmatprep.subr.mxu0 0.0
        %1474 = vmatpush2.msra.mxu0 0.0
        %1475 = vmatprep.subr.mxu0 0.0
        %1476 = vmatpush2.msra.mxu0 0.0
        %1477 = vmatprep.mubr.f32.mxu0 0.0
        %v1478 = vand.u32 %v545, 4294901760
        %1479 = vmatmul.mubr.f32.gmra.mxu0 %v1478
        %v1480 = vpop.f32.mrf.mxu0
        %v1481 = vadd.f32 %v1397, %v1480
        %v1482 = vpop.f32.mrf.mxu0
        %v1483 = vadd.f32 %v1399, %v1482
        %1484 = vdwg.mxu0
        %1485 = vmatprep.subr.mxu0 0.0
        %1486 = vmatpush1.msra.mxu0 0.0
        %1487 = vmatprep.subr.mxu0 0.0
        %1488 = vmatpush1.msra.mxu0 0.0
        %1489 = vmatprep.subr.mxu0 0.0
        %1490 = vmatpush1.msra.mxu0 0.0
        %1491 = vmatprep.subr.mxu0 0.0
        %1492 = vmatpush1.msra.mxu0 0.0
        %1493 = vmatprep.subr.mxu0 0.0
        %1494 = vmatpush1.msra.mxu0 0.0
        %1495 = vmatprep.subr.mxu0 0.0
        %1496 = vmatpush1.msra.mxu0 0.0
        %1497 = vmatprep.subr.mxu0 0.0
        %1498 = vmatpush1.msra.mxu0 0.0
        %1499 = vmatprep.subr.mxu0 0.0
        %1500 = vmatpush1.msra.mxu0 0.0
        %1501 = vmatprep.subr.mxu0 0.0
        %1502 = vmatpush1.msra.mxu0 0.0
        %1503 = vmatprep.subr.mxu0 0.0
        %1504 = vmatpush1.msra.mxu0 0.0
        %1505 = vmatprep.subr.mxu0 0.0
        %1506 = vmatpush1.msra.mxu0 0.0
        %1507 = vmatprep.subr.mxu0 0.0
        %1508 = vmatpush1.msra.mxu0 0.0
        %1509 = vmatprep.subr.mxu0 0.0
        %1510 = vmatpush1.msra.mxu0 0.0
        %1511 = vmatprep.subr.mxu0 0.0
        %1512 = vmatpush1.msra.mxu0 0.0
        %v1513 = vand.u32 %v1069, 4294901760
        %1514 = vmatprep.subr.mxu0 %v1513
        %v1515 = vand.u32 %v1068, 4294901760
        %1516 = vmatpush1.msra.mxu0 %v1515
        %v1517 = vand.u32 %v537, 4294901760
        %1518 = vmatprep.subr.mxu0 %v1517
        %v1519 = vand.u32 %v536, 4294901760
        %1520 = vmatpush1.msra.mxu0 %v1519
        %1521 = vmatprep.subr.mxu0 0.0
        %1522 = vmatpush2.msra.mxu0 0.0
        %1523 = vmatprep.subr.mxu0 0.0
        %1524 = vmatpush2.msra.mxu0 0.0
        %1525 = vmatprep.subr.mxu0 0.0
        %1526 = vmatpush2.msra.mxu0 0.0
        %1527 = vmatprep.subr.mxu0 0.0
        %1528 = vmatpush2.msra.mxu0 0.0
        %1529 = vmatprep.subr.mxu0 0.0
        %1530 = vmatpush2.msra.mxu0 0.0
        %1531 = vmatprep.subr.mxu0 0.0
        %1532 = vmatpush2.msra.mxu0 0.0
        %1533 = vmatprep.subr.mxu0 0.0
        %1534 = vmatpush2.msra.mxu0 0.0
        %1535 = vmatprep.subr.mxu0 0.0
        %1536 = vmatpush2.msra.mxu0 0.0
        %1537 = vmatprep.subr.mxu0 0.0
        %1538 = vmatpush2.msra.mxu0 0.0
        %1539 = vmatprep.subr.mxu0 0.0
        %1540 = vmatpush2.msra.mxu0 0.0
        %1541 = vmatprep.subr.mxu0 0.0
        %1542 = vmatpush2.msra.mxu0 0.0
        %1543 = vmatprep.subr.mxu0 0.0
        %1544 = vmatpush2.msra.mxu0 0.0
        %1545 = vmatprep.subr.mxu0 0.0
        %1546 = vmatpush2.msra.mxu0 0.0
        %1547 = vmatprep.subr.mxu0 0.0
        %1548 = vmatpush2.msra.mxu0 0.0
        %1549 = vmatprep.subr.mxu0 0.0
        %1550 = vmatpush2.msra.mxu0 0.0
        %1551 = vmatprep.subr.mxu0 0.0
        %1552 = vmatpush2.msra.mxu0 0.0
        %1553 = vmatprep.mubr.f32.mxu0 0.0
        %v1554 = vand.u32 %v545, 4294901760
        %1555 = vmatmul.mubr.f32.gmra.mxu0 %v1554
        %v1556 = vpop.f32.mrf.mxu0
        %v1557 = vadd.f32 %v1481, %v1556
        %v1558 = vpop.f32.mrf.mxu0
        %v1559 = vadd.f32 %v1483, %v1558
        %1560 = vdwg.mxu0
        %v1561 = vmul.f32 %v540, 0.99202794
        %v1562 = vmul.f32 %v541, 0.99202794
        %v1563 = vmul.f32 %v1557, 0.001
        %v1564 = vmul.f32 %v1559, 0.001
        %v1565 = vadd.f32 %v1561, %v1563
        %v1566 = vadd.f32 %v1562, %v1564
        %v1567 = vrot.slane %v1565, 7
        %v1568 = vrot.slane %v1566, 7
        %s1569 = scalar_lea.vmem %s453, 7 [#allocation10]
        %v1570 = vld [vmem:[%s1569] ss:$8 sm:$0x3]
        %v1572 = vlaneseq
        %v1573 = vshrl.u32 %v1572, 7
        %v1574 = vsub.s32 0, %v1573
        %v1575 = vrot.slane %v1570, %v1574
        %v1576 = vlaneseq
        %v1577 = vshrl.u32 %v1576, 7
        %v1578 = vsub.s32 1, %v1577
        %v1579 = vrot.slane %v1570, %v1578
        %v1582 = vsel %vm1061, %v1575, %v1567
        %v1583 = vsel %vm1061, %v1579, %v1568
        %v1584 = vadd.f32 %v1582, 1e-05
        %v1585 = vadd.f32 %v1583, 1e-05
        %v1586 = vrsqrt.pop %v1584
        %v1587 = vrsqrt.pop %v1585
        %v1588 = vmul.f32 %v1064, %v1586
        %v1589 = vmul.f32 %v1065, %v1587
        %1590 = vst [vmem:[%s501] sm:$0xff] %v1588
        %1591 = vst [vmem:[%s501 + $0x8] sm:$0xff] %v1589
        %1592 = vst [vmem:[%s508] sm:$0xff] %v1042
        %1593 = vst [vmem:[%s508 + $0x8] sm:$0xff] %v1043
        %1594 = vst [vmem:[%s515] sm:$0xff] %v1565
        %1595 = vst [vmem:[%s515 + $0x8] sm:$0xff] %v1566
        %1596 = vst [vmem:[%s522] sm:$0xff] %v1068
        %1597 = vst [vmem:[%s522 + $0x8] sm:$0xff] %v1069
        %s1598 = sand.u32 %s198, 1
        %s1599 = scalar_lea.sflag [#allocation4], %s1598
        %s1600 = sand.u32 %s198, 1
        %s1601 = smul.addr %s1600, 16
        %s1602 = scalar_lea.vmem [#allocation11], %s1601
        %s1603 = sand.u32 %s39, 1
        %s1604 = scalar_lea.sflag [#allocation13], %s1603
        %s1605 = sand.u32 %s224, 1
        %s1606 = smul.addr %s1605, 16
        %s1607 = scalar_lea.vmem [#allocation12], %s1606
        %s1608 = sand.u32 %s39, 1
        %s1609 = scalar_lea.sflag [#allocation13], %s1608
        %s1610 = sand.u32 %s250, 1
        %s1611 = smul.addr %s1610, 16
        %s1612 = scalar_lea.vmem [#allocation14], %s1611
        %s1613 = sand.u32 %s276, 1
        %s1614 = scalar_lea.sflag [#allocation16], %s1613
        %s1615 = sand.u32 %s276, 1
        %s1616 = smul.addr %s1615, 16
        %s1617 = scalar_lea.vmem [#allocation15], %s1616
        // Predicated region
        $region65: #{tpu_custom_call.1} parent=43 // pred_check
          %p1618 = pneg %p208
        $region66: #{tpu_custom_call.1} parent=43 // pred_check_branch
          %1620 = sbr.rel (%p1618) target = $region68
        $region67: #{tpu_custom_call.1} parent=43 // pred_region
          %s1621 = smul.u32 2, %s39
          %s1623 = ssub.s32 256, 256
          %1624 = vsyncadd %s1599, %s1623
          %s1625 = smul.addr %s1621, 128
          %s1626 = scalar_lea.hbm %s6, %s1625
          %s1628 = sshll.u32 %s1602, 4
          %s1629 = int_to_ptr.vmem [resolvable:$true] %s1628
          %1631 = dma.vmem_to_hbm [thread:$0]  %s1629, 256, %s1626, %s1599
        $region68: #{tpu_custom_call.1} parent=43 // pred_fallthru
          _
        // Predicated region
        $region69: #{tpu_custom_call.1} parent=43 // pred_check
          %p1632 = pneg %p234
        $region70: #{tpu_custom_call.1} parent=43 // pred_check_branch
          %1634 = sbr.rel (%p1632) target = $region72
        $region71: #{tpu_custom_call.1} parent=43 // pred_region
          %s1635 = smul.u32 2, %s39
          %s1637 = ssub.s32 256, 256
          %1638 = vsyncadd %s1604, %s1637
          %s1639 = smul.addr %s1635, 128
          %s1640 = scalar_lea.hbm %s7, %s1639
          %s1642 = sshll.u32 %s1607, 4
          %s1643 = int_to_ptr.vmem [resolvable:$true] %s1642
          %1645 = dma.vmem_to_hbm [thread:$0]  %s1643, 256, %s1640, %s1604
        $region72: #{tpu_custom_call.1} parent=43 // pred_fallthru
          _
        // Predicated region
        $region73: #{tpu_custom_call.1} parent=43 // pred_check
          %p1646 = pneg %p260
        $region74: #{tpu_custom_call.1} parent=43 // pred_check_branch
          %1648 = sbr.rel (%p1646) target = $region76
        $region75: #{tpu_custom_call.1} parent=43 // pred_region
          %s1649 = smul.u32 2, %s39
          %s1651 = ssub.s32 256, 256
          %1652 = vsyncadd %s1609, %s1651
          %s1653 = smul.addr %s1649, 128
          %s1654 = scalar_lea.hbm %s8, %s1653
          %s1656 = sshll.u32 %s1612, 4
          %s1657 = int_to_ptr.vmem [resolvable:$true] %s1656
          %1659 = dma.vmem_to_hbm [thread:$0]  %s1657, 256, %s1654, %s1609
        $region76: #{tpu_custom_call.1} parent=43 // pred_fallthru
          _
        // Predicated region
        $region77: #{tpu_custom_call.1} parent=43 // pred_check
          %p1660 = pneg %p286
        $region78: #{tpu_custom_call.1} parent=43 // pred_check_branch
          %1662 = sbr.rel (%p1660) target = $region80
        $region79: #{tpu_custom_call.1} parent=43 // pred_region
          %s1663 = smul.u32 2, %s39
          %s1665 = ssub.s32 256, 256
          %1666 = vsyncadd %s1614, %s1665
          %s1667 = smul.addr %s1663, 128
          %s1668 = scalar_lea.hbm %s9, %s1667
          %s1670 = sshll.u32 %s1617, 4
          %s1671 = int_to_ptr.vmem [resolvable:$true] %s1670
          %1673 = dma.vmem_to_hbm [thread:$0]  %s1671, 256, %s1668, %s1614
        $region80: #{tpu_custom_call.1} parent=43 // pred_fallthru
          _
      $region44: #{tpu_custom_call.1} parent=5 // pred_fallthru
        _
      %p1674 = scmp.le.s32.totalorder 2, %s34
      // Predicated region
      $region81: #{tpu_custom_call.1} parent=5 // pred_check
        %p1675 = pneg %p1674
      $region82: #{tpu_custom_call.1} parent=5 // pred_check_branch
        %1677 = sbr.rel (%p1675) target = $region84
      $region83: #{tpu_custom_call.1} parent=5 // pred_region
        %s1678 = ssub.s32 %s34, 2
        // Predicated region
        $region85: #{tpu_custom_call.1} parent=83 // pred_check
          %p1679 = pneg %p214
        $region86: #{tpu_custom_call.1} parent=83 // pred_check_branch
          %1681 = sbr.rel (%p1679) target = $region88
        $region87: #{tpu_custom_call.1} parent=83 // pred_region
          %s1682 = sand.u32 %s199, 1
          %s1683 = scalar_lea.sflag [#allocation4], %s1682
          %s1684 = sand.u32 %s199, 1
          %s1685 = smul.addr %s1684, 16
          %s1686 = scalar_lea.vmem [#allocation11], %s1685
          %1687 = dma.done %s1683, 256
        $region88: #{tpu_custom_call.1} parent=83 // pred_fallthru
          _
        // Predicated region
        $region89: #{tpu_custom_call.1} parent=83 // pred_check
          %p1688 = pneg %p240
        $region90: #{tpu_custom_call.1} parent=83 // pred_check_branch
          %1690 = sbr.rel (%p1688) target = $region92
        $region91: #{tpu_custom_call.1} parent=83 // pred_region
          %s1691 = sand.u32 %s40, 1
          %s1692 = scalar_lea.sflag [#allocation13], %s1691
          %s1693 = sand.u32 %s225, 1
          %s1694 = smul.addr %s1693, 16
          %s1695 = scalar_lea.vmem [#allocation12], %s1694
          %1696 = dma.done %s1692, 256
        $region92: #{tpu_custom_call.1} parent=83 // pred_fallthru
          _
        // Predicated region
        $region93: #{tpu_custom_call.1} parent=83 // pred_check
          %p1697 = pneg %p266
        $region94: #{tpu_custom_call.1} parent=83 // pred_check_branch
          %1699 = sbr.rel (%p1697) target = $region96
        $region95: #{tpu_custom_call.1} parent=83 // pred_region
          %s1700 = sand.u32 %s40, 1
          %s1701 = scalar_lea.sflag [#allocation13], %s1700
          %s1702 = sand.u32 %s251, 1
          %s1703 = smul.addr %s1702, 16
          %s1704 = scalar_lea.vmem [#allocation14], %s1703
          %1705 = dma.done %s1701, 256
        $region96: #{tpu_custom_call.1} parent=83 // pred_fallthru
          _
        // Predicated region
        $region97: #{tpu_custom_call.1} parent=83 // pred_check
          %p1706 = pneg %p292
        $region98: #{tpu_custom_call.1} parent=83 // pred_check_branch
          %1708 = sbr.rel (%p1706) target = $region100
        $region99: #{tpu_custom_call.1} parent=83 // pred_region
          %s1709 = sand.u32 %s277, 1
          %s1710 = scalar_lea.sflag [#allocation16], %s1709
          %s1711 = sand.u32 %s277, 1
          %s1712 = smul.addr %s1711, 16
          %s1713 = scalar_lea.vmem [#allocation15], %s1712
          %1714 = dma.done %s1710, 256
        $region100: #{tpu_custom_call.1} parent=83 // pred_fallthru
          _
      $region84: #{tpu_custom_call.1} parent=5 // pred_fallthru
        _
    $region6: #{tpu_custom_call.1} parent=1 // loop_footer
      %s38 = sadd.s32 1, %s34
    $region7: #{tpu_custom_call.1} parent=1 // loop_footer_branch
      %33 = sbr.rel target = $region3
    $region8: #{tpu_custom_call.1} parent=1 // loop_exit
      _
    %1715 = vsyncpa [#allocation3], 1
    %s1716 = scalar_lea.sflag [#allocation3], 1
    %1717 = vsyncpa %s1716, 1
    %1718 = vsyncpa [#allocation6], 1
    %s1719 = scalar_lea.sflag [#allocation6], 1
    %1720 = vsyncpa %s1719, 1
    %1721 = vsyncpa [#allocation9], 1
    %s1722 = scalar_lea.sflag [#allocation9], 1
    %1723 = vsyncpa %s1722, 1
    %1724 = vsyncpa [#allocation4], 1
    %s1725 = scalar_lea.sflag [#allocation4], 1
    %1726 = vsyncpa %s1725, 1
    %1727 = vsyncpa [#allocation13], 1
    %s1728 = scalar_lea.sflag [#allocation13], 1
    %1729 = vsyncpa %s1728, 1
    %1730 = vsyncpa [#allocation16], 1
    %s1731 = scalar_lea.sflag [#allocation16], 1
    %1732 = vsyncpa %s1731, 1

</llo_original>
